<compile_context>
chip_gen: v7x
topology: tpu7x:2x2x1
jax: 0.10.0
libtpu: 0.0.40
codegen_flags: <defaults>
</compile_context>

<pallas_src>
import functools

import numpy as np
import jax
import jax.numpy as jnp
from jax import lax
from jax.experimental import pallas as pl
from jax.experimental.pallas import tpu as pltpu

# Module "parameters" (scalars from __init__; no learnable weights).
INV_TEMPERATURE = 20.0
THR = 0.01

_BIG_I32 = 2 ** 30        # "infinity" index for the where/min first-occurrence argmax
_NEG_PAD = -1.0e30        # similarity assigned to padded desc1 rows via the ones-column


def _round_up(x, m):
    return (x + m - 1) // m * m


@functools.lru_cache(maxsize=None)
def _vmem_capacity_bytes():
    """Physical VMEM per core (generation aware); conservative fallback if unavailable."""
    try:
        return int(pltpu.get_tpu_info().vmem_capacity_bytes)
    except Exception:  # pragma: no cover - emulator / unexpected runtime
        return 64 * 1024 * 1024


def _plan(n0, n1, dp):
    """Pick the column tile TN and the scoped-VMEM limit from the chip's VMEM size."""
    cap = _vmem_capacity_bytes()
    budget = int(cap * 0.40)                              # per-step working-set target
    vmem_limit = min(int(cap * 0.80), 100 * 1024 * 1024)  # scoped limit (headroom kept)
    n1_cap = _round_up(max(n1, 1), 128)
    tn = 128
    for cand in (1024, 512, 384, 256, 128):               # biggest tile that fits wins
        if cand > max(n1_cap, 128):
            continue
        est = (5 * cand * n0 * 4          # dist / e / q / compare-select temporaries
               + 2 * cand * dp * 4        # streamed desc1 tile (double buffered)
               + 2 * dp * n0 * 4          # resident desc0.T (two pipeline buffers)
               + 8 * n0 * 4 + (1 << 16))  # lane-dense accumulators / outputs + slack
        if est <= budget:
            tn = cand
            break
    return tn, vmem_limit


def _row_pass_kernel(d1_ref, d0t_ref,
                     s_out, m_out, qmax_out, qarg_out,
                     s_acc, m_acc, qmax_acc, qarg_acc,
                     *, nbps, tn, n1):
    """Row (desc0-side) statistics of P, streamed over desc1 column tiles.

    Transposed layout: each tile is [TN, N0] (desc1 keypoints on sublanes, desc0 keypoints
    on lanes) so every per-row accumulator / output is lane-dense (1, N0).
    """
    sp = pl.program_id(0)          # column-range split ("parallel" -> both v7x cores)
    b = pl.program_id(1)           # column tile within the split ("arbitrary")
    tile_start = (sp * nbps + b) * tn

    @pl.when(b == 0)
    def _init():
        s_acc[...] = jnp.zeros_like(s_acc)
        m_acc[...] = jnp.full_like(m_acc, -jnp.inf)
        qmax_acc[...] = jnp.full_like(qmax_acc, -jnp.inf)
        qarg_acc[...] = jnp.zeros_like(qarg_acc)

    @pl.when(tile_start < n1)      # skip tiles that are pure N1 padding
    def _compute():
        # S tile, already scaled by inv_temperature (folded into d1 in the wrapper).
        # Padded desc1 rows come out of the MXU as -1e30 through the augmented ones
        # column of d0t, so no per-tile mask / bias op is needed.
        dist = jnp.dot(d1_ref[...], d0t_ref[...],
                       preferred_element_type=jnp.float32)          # [TN, N0]

        # Exact per-column log-sum-exp (all N0 rows are resident -> csum is complete).
        m_col = jnp.max(dist, axis=1, keepdims=True)                 # [TN, 1]
        e = jnp.exp(dist - m_col)                                    # [TN, N0], in (0, 1]
        csum = jnp.sum(e, axis=1, keepdims=True)                     # [TN, 1]
        logc = m_col + jnp.log(csum)                                 # [TN, 1]

        # q[i,j] = S[i,j] - 0.5*logC[j]; row-argmax of q == row-argmax of P.
        q = dist - 0.5 * logc                                        # [TN, N0]
        blk_max = jnp.max(q, axis=0, keepdims=True)                  # [1, N0]
        sub_ids = lax.broadcasted_iota(jnp.int32, q.shape, 0)
        blk_arg = jnp.min(jnp.where(q == blk_max, sub_ids, _BIG_I32),
                          axis=0, keepdims=True)                     # first occurrence
        blk_arg = blk_arg + tile_start                               # global desc1 index
        take = blk_max > qmax_acc[...]        # strict ">" keeps the earlier tile on ties
        qarg_acc[...] = jnp.where(take, blk_arg, qarg_acc[...])
        qmax_acc[...] = jnp.maximum(qmax_acc[...], blk_max)

        # Row sums R[i] ~ sum_j exp(S[i,j] - M) with M the running TRUE max of S seen by
        # this split (online logsumexp; replaces the Cauchy-Schwarz bound, so no global
        # underflow hazard).  w == 0 exactly on padded desc1 rows.
        m_blk = jnp.max(m_col, axis=0, keepdims=True)                # (1, 1)
        m_new = jnp.maximum(m_acc[...], m_blk)                       # (1, 1)
        w = jnp.exp(m_col - m_new)                                   # [TN, 1]
        rescale = jnp.exp(m_acc[...] - m_new)                        # (1, 1)
        s_acc[...] = s_acc[...] * rescale + jnp.sum(e * w, axis=0, keepdims=True)
        m_acc[...] = m_new

    @pl.when(b == nbps - 1)
    def _finalize():
        s_out[0] = s_acc[...]
        m_out[0] = m_acc[...]
        qmax_out[0] = qmax_acc[...]
        qarg_out[0] = qarg_acc[...]


def _col_pass_kernel(d1_ref, d0t_ref, logr_ref, colarg_ref, *, tn, n1):
    """Per-desc1-keypoint (column of P) argmax.  No exp: per-column factors drop out."""

    @pl.when(pl.program_id(0) * tn < n1)    # skip tiles that are pure N1 padding
    def _compute():
        dist = jnp.dot(d1_ref[...], d0t_ref[...],
                       preferred_element_type=jnp.float32)           # [TN, N0]
        score = dist - 0.5 * logr_ref[...]                            # logr is (1, N0)
        smax = jnp.max(score, axis=1, keepdims=True)                  # [TN, 1]
        lane_ids = lax.broadcasted_iota(jnp.int32, score.shape, 1)
        colarg_ref[...] = jnp.min(jnp.where(score == smax, lane_ids, _BIG_I32),
                                  axis=1, keepdims=True)              # [TN, 1]


@functools.partial(jax.jit, static_argnums=(2, 3, 4))
def dual_softmax_match(desc0, desc1, inv_temperature=INV_TEMPERATURE, thr=THR,
                       matmul_dtype=None):
    """Returns (row_pmax [N0], row_arg [N0], col_arg [N1], keep [N0] bool).

    keep[i] is True iff (i, row_arg[i]) is a mutual-nearest-neighbour match of the
    dual-softmax matrix P with P[i, row_arg[i]] >= thr - the same pairs the original
    torch.nonzero(...) finds (modulo exact float ties, see module docstring).

    matmul_dtype: set to jnp.bfloat16 on v7x (bf16-native MXU) to halve operand VMEM/DMA;
    accumulation stays f32 (expected ~1e-3 relative error on the match confidences).
    """
    n0, d = desc0.shape
    n1, d1 = desc1.shape
    assert d == d1, "descriptor dims must match"
    inv_t = float(inv_temperature)
    f32 = jnp.float32

    # Descriptor dim padded to a lane multiple once in HBM, +1 column for the pad marker.
    dp = _round_up(d + 1, 128)
    tn, vmem_limit = _plan(n0, n1, dp)

    nb_raw = -(-n1 // tn)
    n_splits = 2 if nb_raw >= 2 else 1        # column-range splits -> both TCs on v7x
    nbps = -(-nb_raw // n_splits)             # column tiles per split
    n1p = tn * n_splits * nbps

    op_dtype = f32 if matmul_dtype is None else matmul_dtype

    # desc0.T padded in D, with an extra all-ones row d (pairs with the -1e30 pad marker).
    d0t = (jnp.zeros((dp, n0), f32)
           .at[:d, :].set(desc0.astype(f32).T)
           .at[d, :].set(1.0))
    # desc1 padded in D and N1, inv_temperature folded in (no per-tile scale op); padded
    # rows carry -1e30 in column d so their similarities never contaminate any statistic.
    d1a = (jnp.zeros((n1p, dp), f32)
           .at[:n1, :d].set(desc1.astype(f32) * inv_t)
           .at[n1:, d].set(jnp.float32(_NEG_PAD)))
    d0t = d0t.astype(op_dtype)
    d1a = d1a.astype(op_dtype)

    params_a = pltpu.CompilerParams(dimension_semantics=("parallel", "arbitrary"),
                                    vmem_limit_bytes=vmem_limit)
    params_b = pltpu.CompilerParams(dimension_semantics=("parallel",),
                                    vmem_limit_bytes=vmem_limit)

    # ---- Pass A: per-row (desc0) argmax / max of P and the row logsumexp pieces ------
    s_part, m_part, qmax_part, qarg_part = pl.pallas_call(
        functools.partial(_row_pass_kernel, nbps=nbps, tn=tn, n1=n1),
        out_shape=(jax.ShapeDtypeStruct((n_splits, 1, n0), f32),
                   jax.ShapeDtypeStruct((n_splits, 1, 1), f32),
                   jax.ShapeDtypeStruct((n_splits, 1, n0), f32),
                   jax.ShapeDtypeStruct((n_splits, 1, n0), jnp.int32)),
        grid=(n_splits, nbps),
        in_specs=[pl.BlockSpec((tn, dp), lambda sp, b: (sp * nbps + b, 0)),
                  pl.BlockSpec((dp, n0), lambda sp, b: (0, 0))],
        out_specs=(pl.BlockSpec((1, 1, n0), lambda sp, b: (sp, 0, 0)),
                   pl.BlockSpec((1, 1, 1), lambda sp, b: (sp, 0, 0)),
                   pl.BlockSpec((1, 1, n0), lambda sp, b: (sp, 0, 0)),
                   pl.BlockSpec((1, 1, n0), lambda sp, b: (sp, 0, 0))),
        scratch_shapes=[pltpu.VMEM((1, n0), f32),        # running row sums (shifted)
                        pltpu.VMEM((1, 1), f32),         # running true max of S
                        pltpu.VMEM((1, n0), f32),        # running row max of q
                        pltpu.VMEM((1, n0), jnp.int32)], # running row argmax
        compiler_params=params_a,
    )(d1a, d0t)

    # Cross-split combine: O(n_splits * N0) plain-JAX ops.
    s_part = s_part[:, 0, :]
    m_part = m_part[:, 0, 0]
    qmax_part = qmax_part[:, 0, :]
    qarg_part = qarg_part[:, 0, :]

    m_glob = jnp.max(m_part)
    s_tot = jnp.sum(s_part * jnp.exp(m_part - m_glob)[:, None], axis=0)       # [N0]
    logr = m_glob + jnp.log(jnp.maximum(s_tot, jnp.float32(1e-37)))           # [N0]

    qmax = jnp.max(qmax_part, axis=0)
    split_sel = jnp.argmax(qmax_part, axis=0)            # first split wins exact ties
    row_arg = jnp.take_along_axis(qarg_part, split_sel[None, :], axis=0)[0]
    # log Pmax <= 0 mathematically; the clamp only guards degenerate fp corner cases.
    row_pmax = jnp.exp(jnp.minimum(2.0 * qmax - logr, 0.0))

    # ---- Pass B: per-column (desc1) argmax of P; parallel over column tiles ----------
    col_arg_full = pl.pallas_call(
        functools.partial(_col_pass_kernel, tn=tn, n1=n1),
        out_shape=jax.ShapeDtypeStruct((n1p, 1), jnp.int32),
        grid=(n1p // tn,),
        in_specs=[pl.BlockSpec((tn, dp), lambda b: (b, 0)),
                  pl.BlockSpec((dp, n0), lambda b: (0, 0)),
                  pl.BlockSpec((1, n0), lambda b: (0, 0))],
        out_specs=pl.BlockSpec((tn, 1), lambda b: (b, 0)),
        compiler_params=params_b,
    )(d1a, d0t, logr.reshape(1, n0))
    col_arg = col_arg_full[:n1, 0]

    mutual = col_arg[row_arg] == jnp.arange(n0, dtype=jnp.int32)
    keep = mutual & (row_pmax >= thr)
    return row_pmax, row_arg, col_arg, keep


def dual_softmax_matcher_forward(info0, info1, inv_temperature=INV_TEMPERATURE, thr=THR):
    """Mirrors DualSoftmaxMatcher.forward -> (mkpts0, mkpts1, mconf)."""
    row_pmax, row_arg, _, keep = dual_softmax_match(
        info0["descriptors"], info1["descriptors"], inv_temperature, thr)
    row_pmax, row_arg, keep = jax.block_until_ready((row_pmax, row_arg, keep))

    # TODO(synk): torch.nonzero has a data-dependent output shape; the final index
    # compaction is done on the host over the O(N) kernel outputs.
    rows = np.nonzero(np.asarray(keep))[0]
    cols = np.asarray(row_arg)[rows]
    mkpts0 = np.asarray(info0["keypoints"])[rows]
    mkpts1 = np.asarray(info1["keypoints"])[cols]
    mconf = np.asarray(row_pmax)[rows]
    return mkpts0, mkpts1, mconf


def reference_P(desc0, desc1, inv_temperature=INV_TEMPERATURE):
    """Debug path: the full dual-softmax matrix P (pure JAX, O(N^2) memory).

    inv_temperature is folded into the desc1 operand exactly as the kernel does
    (mathematically identical to `(desc0 @ desc1.T) * inv_temperature`), so the reference
    and the kernel see the same operand roundings on the MXU.
    """
    dist = desc0.astype(jnp.float32) @ (desc1.astype(jnp.float32) * inv_temperature).T
    return jax.nn.softmax(dist, axis=-2) * jax.nn.softmax(dist, axis=-1)


if __name__ == "__main__":
    # Small synthetic problem: N0 = N1 = 128 keypoints, D = 32 descriptor dims.
    N0, N1, D = 128, 128, 32
    key = jax.random.PRNGKey(0)
    k0, k1, k2, k3 = jax.random.split(key, 4)

    desc0 = jax.random.normal(k0, (N0, D), dtype=jnp.float32)
    desc1 = jax.random.normal(k1, (N1, D), dtype=jnp.float32)
    desc0 = desc0 / jnp.linalg.norm(desc0, axis=-1, keepdims=True)
    desc1 = desc1 / jnp.linalg.norm(desc1, axis=-1, keepdims=True)

    kpts0 = jax.random.uniform(k2, (N0, 2), dtype=jnp.float32) * 256.0
    kpts1 = jax.random.uniform(k3, (N1, 2), dtype=jnp.float32) * 256.0

    info0 = {"descriptors": desc0, "keypoints": kpts0}
    info1 = {"descriptors": desc1, "keypoints": kpts1}

    row_pmax, row_arg, col_arg, keep = dual_softmax_match(desc0, desc1)
    jax.block_until_ready((row_pmax, row_arg, col_arg, keep))
    mkpts0, mkpts1, mconf = dual_softmax_matcher_forward(info0, info1)

    # Validate against a pure-JAX reference of the original torch math.
    P = np.asarray(reference_P(desc0, desc1))
    ref_row_pmax = P.max(axis=1)
    ref_row_arg = P.argmax(axis=1)
    ref_col_arg = P.argmax(axis=0)
    ref_mask = ((P == P.max(axis=1, keepdims=True))
                & (P == P.max(axis=0, keepdims=True)) & (P >= THR))
    ref_rows, ref_cols = np.nonzero(ref_mask)

    assert np.allclose(np.asarray(row_pmax), ref_row_pmax, rtol=2e-3, atol=1e-6)
    assert np.array_equal(np.asarray(row_arg), ref_row_arg)
    assert np.array_equal(np.asarray(col_arg), ref_col_arg)

    rows = np.nonzero(np.asarray(keep))[0]
    cols = np.asarray(row_arg)[rows]
    assert np.array_equal(rows, ref_rows) and np.array_equal(cols, ref_cols)
    assert np.allclose(mconf, P[ref_rows, ref_cols], rtol=2e-3, atol=1e-6)
    assert mkpts0.shape == mkpts1.shape and mkpts0.shape[0] == mconf.shape[0]

    print("KERNEL_OK")
</pallas_src>

<mosaic_0001>
module attributes {stable_mosaic.version = 11 : i64} {
  func.func @_row_pass_kernel(%arg0: i32, %arg1: i32, %arg2: memref<128x128xf32, #tpu.memory_space<vmem>>, %arg3: memref<128x128xf32, #tpu.memory_space<vmem>>, %arg4: memref<1x1x128xf32, #tpu.memory_space<vmem>>, %arg5: memref<1x1x1xf32, #tpu.memory_space<vmem>>, %arg6: memref<1x1x128xf32, #tpu.memory_space<vmem>>, %arg7: memref<1x1x128xi32, #tpu.memory_space<vmem>>, %arg8: memref<1x128xf32, #tpu.memory_space<vmem>>, %arg9: memref<1x1xf32, #tpu.memory_space<vmem>>, %arg10: memref<1x128xf32, #tpu.memory_space<vmem>>, %arg11: memref<1x128xi32, #tpu.memory_space<vmem>>) attributes {dimension_semantics = [#tpu.dimension_semantics<parallel>, #tpu.dimension_semantics<arbitrary>], iteration_bounds = array<i64: 1, 1>, scalar_prefetch = 0 : i64, scratch_operands = 4 : i64, tpu.core_type = #tpu.core_type<tc>, window_params = [{transform_indices = @transform_0, window_bounds = array<i64: 128, 128>}, {pipeline_mode = #tpu.pipeline_mode<synchronous>, transform_indices = @transform_1, window_bounds = array<i64: 128, 128>}, {transform_indices = @transform_2, window_bounds = array<i64: 1, 1, 128>}, {transform_indices = @transform_3, window_bounds = array<i64: 1, 1, 1>}, {transform_indices = @transform_4, window_bounds = array<i64: 1, 1, 128>}, {transform_indices = @transform_5, window_bounds = array<i64: 1, 1, 128>}]} {
    %c1_i32 = arith.constant 1 : i32
    %0 = arith.muli %arg0, %c1_i32 : i32
    %1 = arith.addi %0, %arg1 : i32
    %c128_i32 = arith.constant 128 : i32
    %2 = arith.muli %1, %c128_i32 : i32
    %c0_i32 = arith.constant 0 : i32
    %3 = arith.cmpi eq, %arg1, %c0_i32 : i32
    %4 = arith.extui %3 : i1 to i32
    %c0_i32_0 = arith.constant 0 : i32
    %5 = arith.cmpi ne, %4, %c0_i32_0 : i32
    scf.if %5 {
      %cst = arith.constant 0.000000e+00 : f32
      %12 = vector.broadcast %cst : f32 to vector<1x128xf32>
      %c0 = arith.constant 0 : index
      %c0_5 = arith.constant 0 : index
      %13 = vector.load %arg8[%c0, %c0_5] : memref<1x128xf32, #tpu.memory_space<vmem>>, vector<1x128xf32>
      tpu.vector_store %arg8[%c0, %c0_5], %12 {strides = array<i32>} : memref<1x128xf32, #tpu.memory_space<vmem>>, vector<1x128xf32>,
      %cst_6 = arith.constant 0xFF800000 : f32
      %14 = vector.broadcast %cst_6 : f32 to vector<1x1xf32>
      %c0_7 = arith.constant 0 : index
      %c0_8 = arith.constant 0 : index
      %15 = vector.load %arg9[%c0_7, %c0_8] : memref<1x1xf32, #tpu.memory_space<vmem>>, vector<1x1xf32>
      tpu.vector_store %arg9[%c0_7, %c0_8], %14 {strides = array<i32>} : memref<1x1xf32, #tpu.memory_space<vmem>>, vector<1x1xf32>,
      %cst_9 = arith.constant 0xFF800000 : f32
      %16 = vector.broadcast %cst_9 : f32 to vector<1x128xf32>
      %c0_10 = arith.constant 0 : index
      %c0_11 = arith.constant 0 : index
      %17 = vector.load %arg10[%c0_10, %c0_11] : memref<1x128xf32, #tpu.memory_space<vmem>>, vector<1x128xf32>
      tpu.vector_store %arg10[%c0_10, %c0_11], %16 {strides = array<i32>} : memref<1x128xf32, #tpu.memory_space<vmem>>, vector<1x128xf32>,
      %c0_i32_12 = arith.constant 0 : i32
      %18 = vector.broadcast %c0_i32_12 : i32 to vector<1x128xi32>
      %c0_13 = arith.constant 0 : index
      %c0_14 = arith.constant 0 : index
      %19 = vector.load %arg11[%c0_13, %c0_14] : memref<1x128xi32, #tpu.memory_space<vmem>>, vector<1x128xi32>
      tpu.vector_store %arg11[%c0_13, %c0_14], %18 {strides = array<i32>} : memref<1x128xi32, #tpu.memory_space<vmem>>, vector<1x128xi32>,
    } else {
    }
    %c128_i32_1 = arith.constant 128 : i32
    %6 = arith.cmpi slt, %2, %c128_i32_1 : i32
    %7 = arith.extui %6 : i1 to i32
    %c0_i32_2 = arith.constant 0 : i32
    %8 = arith.cmpi ne, %7, %c0_i32_2 : i32
    scf.if %8 {
      %c0 = arith.constant 0 : index
      %c0_5 = arith.constant 0 : index
      %12 = vector.load %arg2[%c0, %c0_5] : memref<128x128xf32, #tpu.memory_space<vmem>>, vector<128x128xf32>
      %c0_6 = arith.constant 0 : index
      %c0_7 = arith.constant 0 : index
      %13 = vector.load %arg3[%c0_6, %c0_7] : memref<128x128xf32, #tpu.memory_space<vmem>>, vector<128x128xf32>
      %cst = arith.constant dense<0.000000e+00> : vector<128x128xf32>
      %14 = tpu.matmul %12, %13, %cst {dimension_numbers = #tpu.dot_dimension_numbers<[1], [0], [0], [1], [0, 0, 1, 1], [], []>} : vector<128x128xf32>, vector<128x128xf32>, vector<128x128xf32> -> vector<128x128xf32>
      %cst_8 = arith.constant dense<0xFF800000> : vector<128xf32>
      %15 = vector.multi_reduction <maximumf>, %14, %cst_8 [1] : vector<128x128xf32> to vector<128xf32>
      %16 = vector.shape_cast %15 : vector<128xf32> to vector<128x1xf32>
      %17 = vector.broadcast %16 : vector<128x1xf32> to vector<128x128xf32>
      %18 = arith.subf %14, %17 : vector<128x128xf32>
      %19 = math.exp %18 : vector<128x128xf32>
      %cst_9 = arith.constant dense<0.000000e+00> : vector<128xf32>
      %20 = vector.multi_reduction <add>, %19, %cst_9 [1] : vector<128x128xf32> to vector<128xf32>
      %21 = vector.shape_cast %20 : vector<128xf32> to vector<128x1xf32>
      %22 = math.log %21 : vector<128x1xf32>
      %23 = arith.addf %16, %22 : vector<128x1xf32>
      %cst_10 = arith.constant 5.000000e-01 : f32
      %24 = vector.broadcast %cst_10 : f32 to vector<128x1xf32>
      %25 = arith.mulf %24, %23 : vector<128x1xf32>
      %26 = vector.broadcast %25 : vector<128x1xf32> to vector<128x128xf32>
      %27 = arith.subf %14, %26 : vector<128x128xf32>
      %cst_11 = arith.constant dense<0xFF800000> : vector<128xf32>
      %28 = vector.multi_reduction <maximumf>, %27, %cst_11 [0] : vector<128x128xf32> to vector<128xf32>
      %29 = vector.shape_cast %28 : vector<128xf32> to vector<1x128xf32>
      %30 = tpu.iota {dimensions = array<i32: 0>} : vector<128x128xi32>
      %31 = vector.broadcast %29 : vector<1x128xf32> to vector<128x128xf32>
      %32 = arith.cmpf oeq, %27, %31 : vector<128x128xf32>
      %c1073741824_i32 = arith.constant 1073741824 : i32
      %33 = vector.broadcast %c1073741824_i32 : i32 to vector<128x128xi32>
      %34 = arith.select %32, %30, %33 : vector<128x128xi1>, vector<128x128xi32>
      %cst_12 = arith.constant dense<2147483647> : vector<128xi32>
      %35 = vector.multi_reduction <minsi>, %34, %cst_12 [0] : vector<128x128xi32> to vector<128xi32>
      %36 = vector.shape_cast %35 : vector<128xi32> to vector<1x128xi32>
      %37 = vector.broadcast %2 : i32 to vector<1x128xi32>
      %38 = arith.addi %36, %37 : vector<1x128xi32>
      %c0_13 = arith.constant 0 : index
      %c0_14 = arith.constant 0 : index
      %39 = vector.load %arg10[%c0_13, %c0_14] : memref<1x128xf32, #tpu.memory_space<vmem>>, vector<1x128xf32>
      %40 = arith.cmpf ogt, %29, %39 : vector<1x128xf32>
      %c0_15 = arith.constant 0 : index
      %c0_16 = arith.constant 0 : index
      %41 = vector.load %arg11[%c0_15, %c0_16] : memref<1x128xi32, #tpu.memory_space<vmem>>, vector<1x128xi32>
      %42 = arith.select %40, %38, %41 : vector<1x128xi1>, vector<1x128xi32>
      %c0_17 = arith.constant 0 : index
      %c0_18 = arith.constant 0 : index
      %43 = vector.load %arg11[%c0_17, %c0_18] : memref<1x128xi32, #tpu.memory_space<vmem>>, vector<1x128xi32>
      tpu.vector_store %arg11[%c0_17, %c0_18], %42 {strides = array<i32>} : memref<1x128xi32, #tpu.memory_space<vmem>>, vector<1x128xi32>,
      %c0_19 = arith.constant 0 : index
      %c0_20 = arith.constant 0 : index
      %44 = vector.load %arg10[%c0_19, %c0_20] : memref<1x128xf32, #tpu.memory_space<vmem>>, vector<1x128xf32>
      %45 = arith.maximumf %44, %29 : vector<1x128xf32>
      %c0_21 = arith.constant 0 : index
      %c0_22 = arith.constant 0 : index
      %46 = vector.load %arg10[%c0_21, %c0_22] : memref<1x128xf32, #tpu.memory_space<vmem>>, vector<1x128xf32>
      tpu.vector_store %arg10[%c0_21, %c0_22], %45 {strides = array<i32>} : memref<1x128xf32, #tpu.memory_space<vmem>>, vector<1x128xf32>,
      %cst_23 = arith.constant dense<0xFF800000> : vector<1xf32>
      %47 = vector.multi_reduction <maximumf>, %16, %cst_23 [0] : vector<128x1xf32> to vector<1xf32>
      %48 = vector.shape_cast %47 : vector<1xf32> to vector<1x1xf32>
      %c0_24 = arith.constant 0 : index
      %c0_25 = arith.constant 0 : index
      %49 = vector.load %arg9[%c0_24, %c0_25] : memref<1x1xf32, #tpu.memory_space<vmem>>, vector<1x1xf32>
      %50 = arith.maximumf %49, %48 : vector<1x1xf32>
      %51 = vector.broadcast %50 : vector<1x1xf32> to vector<128x1xf32>
      %52 = arith.subf %16, %51 : vector<128x1xf32>
      %53 = math.exp %52 : vector<128x1xf32>
      %c0_26 = arith.constant 0 : index
      %c0_27 = arith.constant 0 : index
      %54 = vector.load %arg9[%c0_26, %c0_27] : memref<1x1xf32, #tpu.memory_space<vmem>>, vector<1x1xf32>
      %55 = arith.subf %54, %50 : vector<1x1xf32>
      %56 = math.exp %55 : vector<1x1xf32>
      %c0_28 = arith.constant 0 : index
      %c0_29 = arith.constant 0 : index
      %57 = vector.load %arg8[%c0_28, %c0_29] : memref<1x128xf32, #tpu.memory_space<vmem>>, vector<1x128xf32>
      %58 = vector.broadcast %56 : vector<1x1xf32> to vector<1x128xf32>
      %59 = arith.mulf %57, %58 : vector<1x128xf32>
      %60 = vector.broadcast %53 : vector<128x1xf32> to vector<128x128xf32>
      %61 = arith.mulf %19, %60 : vector<128x128xf32>
      %cst_30 = arith.constant dense<0.000000e+00> : vector<128xf32>
      %62 = vector.multi_reduction <add>, %61, %cst_30 [0] : vector<128x128xf32> to vector<128xf32>
      %63 = vector.shape_cast %62 : vector<128xf32> to vector<1x128xf32>
      %64 = arith.addf %59, %63 : vector<1x128xf32>
      %c0_31 = arith.constant 0 : index
      %c0_32 = arith.constant 0 : index
      %65 = vector.load %arg8[%c0_31, %c0_32] : memref<1x128xf32, #tpu.memory_space<vmem>>, vector<1x128xf32>
      tpu.vector_store %arg8[%c0_31, %c0_32], %64 {strides = array<i32>} : memref<1x128xf32, #tpu.memory_space<vmem>>, vector<1x128xf32>,
      %c0_33 = arith.constant 0 : index
      %c0_34 = arith.constant 0 : index
      %66 = vector.load %arg9[%c0_33, %c0_34] : memref<1x1xf32, #tpu.memory_space<vmem>>, vector<1x1xf32>
      tpu.vector_store %arg9[%c0_33, %c0_34], %50 {strides = array<i32>} : memref<1x1xf32, #tpu.memory_space<vmem>>, vector<1x1xf32>,
    } else {
    }
    %c0_i32_3 = arith.constant 0 : i32
    %9 = arith.cmpi eq, %arg1, %c0_i32_3 : i32
    %10 = arith.extui %9 : i1 to i32
    %c0_i32_4 = arith.constant 0 : i32
    %11 = arith.cmpi ne, %10, %c0_i32_4 : i32
    scf.if %11 {
      %c0 = arith.constant 0 : index
      %c0_5 = arith.constant 0 : index
      %12 = vector.load %arg8[%c0, %c0_5] : memref<1x128xf32, #tpu.memory_space<vmem>>, vector<1x128xf32>
      %c0_6 = arith.constant 0 : index
      %c0_7 = arith.constant 0 : index
      %c0_8 = arith.constant 0 : index
      %13 = vector.load %arg4[%c0_6, %c0_7, %c0_8] : memref<1x1x128xf32, #tpu.memory_space<vmem>>, vector<1x1x128xf32>
      %14 = vector.shape_cast %13 : vector<1x1x128xf32> to vector<1x128xf32>
      %15 = vector.shape_cast %12 : vector<1x128xf32> to vector<1x1x128xf32>
      tpu.vector_store %arg4[%c0_6, %c0_7, %c0_8], %15 {strides = array<i32>} : memref<1x1x128xf32, #tpu.memory_space<vmem>>, vector<1x1x128xf32>,
      %c0_9 = arith.constant 0 : index
      %c0_10 = arith.constant 0 : index
      %16 = vector.load %arg9[%c0_9, %c0_10] : memref<1x1xf32, #tpu.memory_space<vmem>>, vector<1x1xf32>
      %c0_11 = arith.constant 0 : index
      %c0_12 = arith.constant 0 : index
      %c0_13 = arith.constant 0 : index
      %17 = vector.load %arg5[%c0_11, %c0_12, %c0_13] : memref<1x1x1xf32, #tpu.memory_space<vmem>>, vector<1x1x1xf32>
      %18 = vector.shape_cast %17 : vector<1x1x1xf32> to vector<1x1xf32>
      %19 = vector.shape_cast %16 : vector<1x1xf32> to vector<1x1x1xf32>
      tpu.vector_store %arg5[%c0_11, %c0_12, %c0_13], %19 {strides = array<i32>} : memref<1x1x1xf32, #tpu.memory_space<vmem>>, vector<1x1x1xf32>,
      %c0_14 = arith.constant 0 : index
      %c0_15 = arith.constant 0 : index
      %20 = vector.load %arg10[%c0_14, %c0_15] : memref<1x128xf32, #tpu.memory_space<vmem>>, vector<1x128xf32>
      %c0_16 = arith.constant 0 : index
      %c0_17 = arith.constant 0 : index
      %c0_18 = arith.constant 0 : index
      %21 = vector.load %arg6[%c0_16, %c0_17, %c0_18] : memref<1x1x128xf32, #tpu.memory_space<vmem>>, vector<1x1x128xf32>
      %22 = vector.shape_cast %21 : vector<1x1x128xf32> to vector<1x128xf32>
      %23 = vector.shape_cast %20 : vector<1x128xf32> to vector<1x1x128xf32>
      tpu.vector_store %arg6[%c0_16, %c0_17, %c0_18], %23 {strides = array<i32>} : memref<1x1x128xf32, #tpu.memory_space<vmem>>, vector<1x1x128xf32>,
      %c0_19 = arith.constant 0 : index
      %c0_20 = arith.constant 0 : index
      %24 = vector.load %arg11[%c0_19, %c0_20] : memref<1x128xi32, #tpu.memory_space<vmem>>, vector<1x128xi32>
      %c0_21 = arith.constant 0 : index
      %c0_22 = arith.constant 0 : index
      %c0_23 = arith.constant 0 : index
      %25 = vector.load %arg7[%c0_21, %c0_22, %c0_23] : memref<1x1x128xi32, #tpu.memory_space<vmem>>, vector<1x1x128xi32>
      %26 = vector.shape_cast %25 : vector<1x1x128xi32> to vector<1x128xi32>
      %27 = vector.shape_cast %24 : vector<1x128xi32> to vector<1x1x128xi32>
      tpu.vector_store %arg7[%c0_21, %c0_22, %c0_23], %27 {strides = array<i32>} : memref<1x1x128xi32, #tpu.memory_space<vmem>>, vector<1x1x128xi32>,
    } else {
    }
    return
  }
  func.func @transform_0(%arg0: i32, %arg1: i32) -> (i32, i32) {
    %c1_i32 = arith.constant 1 : i32
    %0 = arith.muli %arg0, %c1_i32 : i32
    %1 = arith.addi %0, %arg1 : i32
    %c0_i32 = arith.constant 0 : i32
    %c0_i32_0 = arith.constant 0 : i32
    return %1, %c0_i32 : i32, i32
  }
  func.func @transform_1(%arg0: i32, %arg1: i32) -> (i32, i32) {
    %c0_i32 = arith.constant 0 : i32
    %c0_i32_0 = arith.constant 0 : i32
    %c0_i32_1 = arith.constant 0 : i32
    return %c0_i32, %c0_i32_0 : i32, i32
  }
  func.func @transform_2(%arg0: i32, %arg1: i32) -> (i32, i32, i32) {
    %c0_i32 = arith.constant 0 : i32
    %c0_i32_0 = arith.constant 0 : i32
    %c0_i32_1 = arith.constant 0 : i32
    return %arg0, %c0_i32, %c0_i32_0 : i32, i32, i32
  }
  func.func @transform_3(%arg0: i32, %arg1: i32) -> (i32, i32, i32) {
    %c0_i32 = arith.constant 0 : i32
    %c0_i32_0 = arith.constant 0 : i32
    %c0_i32_1 = arith.constant 0 : i32
    return %arg0, %c0_i32, %c0_i32_0 : i32, i32, i32
  }
  func.func @transform_4(%arg0: i32, %arg1: i32) -> (i32, i32, i32) {
    %c0_i32 = arith.constant 0 : i32
    %c0_i32_0 = arith.constant 0 : i32
    %c0_i32_1 = arith.constant 0 : i32
    return %arg0, %c0_i32, %c0_i32_0 : i32, i32, i32
  }
  func.func @transform_5(%arg0: i32, %arg1: i32) -> (i32, i32, i32) {
    %c0_i32 = arith.constant 0 : i32
    %c0_i32_0 = arith.constant 0 : i32
    %c0_i32_1 = arith.constant 0 : i32
    return %arg0, %c0_i32, %c0_i32_0 : i32, i32, i32
  }
}

module attributes {stable_mosaic.version = 11 : i64} {
  func.func @_col_pass_kernel(%arg0: i32, %arg1: memref<128x128xf32, #tpu.memory_space<vmem>>, %arg2: memref<128x128xf32, #tpu.memory_space<vmem>>, %arg3: memref<1x128xf32, #tpu.memory_space<vmem>>, %arg4: memref<128x1xi32, #tpu.memory_space<vmem>>) attributes {dimension_semantics = [#tpu.dimension_semantics<parallel>], iteration_bounds = array<i64: 1>, scalar_prefetch = 0 : i64, scratch_operands = 0 : i64, tpu.core_type = #tpu.core_type<tc>, window_params = [{transform_indices = @transform_0, window_bounds = array<i64: 128, 128>}, {pipeline_mode = #tpu.pipeline_mode<synchronous>, transform_indices = @transform_1, window_bounds = array<i64: 128, 128>}, {pipeline_mode = #tpu.pipeline_mode<synchronous>, transform_indices = @transform_2, window_bounds = array<i64: 1, 128>}, {transform_indices = @transform_3, window_bounds = array<i64: 128, 1>}]} {
    %c128_i32 = arith.constant 128 : i32
    %0 = arith.muli %arg0, %c128_i32 : i32
    %c128_i32_0 = arith.constant 128 : i32
    %1 = arith.cmpi slt, %0, %c128_i32_0 : i32
    %2 = arith.extui %1 : i1 to i32
    %c0_i32 = arith.constant 0 : i32
    %3 = arith.cmpi ne, %2, %c0_i32 : i32
    scf.if %3 {
      %c0 = arith.constant 0 : index
      %c0_1 = arith.constant 0 : index
      %4 = vector.load %arg1[%c0, %c0_1] : memref<128x128xf32, #tpu.memory_space<vmem>>, vector<128x128xf32>
      %c0_2 = arith.constant 0 : index
      %c0_3 = arith.constant 0 : index
      %5 = vector.load %arg2[%c0_2, %c0_3] : memref<128x128xf32, #tpu.memory_space<vmem>>, vector<128x128xf32>
      %cst = arith.constant dense<0.000000e+00> : vector<128x128xf32>
      %6 = tpu.matmul %4, %5, %cst {dimension_numbers = #tpu.dot_dimension_numbers<[1], [0], [0], [1], [0, 0, 1, 1], [], []>} : vector<128x128xf32>, vector<128x128xf32>, vector<128x128xf32> -> vector<128x128xf32>
      %c0_4 = arith.constant 0 : index
      %c0_5 = arith.constant 0 : index
      %7 = vector.load %arg3[%c0_4, %c0_5] : memref<1x128xf32, #tpu.memory_space<vmem>>, vector<1x128xf32>
      %cst_6 = arith.constant 5.000000e-01 : f32
      %8 = vector.broadcast %cst_6 : f32 to vector<1x128xf32>
      %9 = arith.mulf %8, %7 : vector<1x128xf32>
      %10 = vector.broadcast %9 : vector<1x128xf32> to vector<128x128xf32>
      %11 = arith.subf %6, %10 : vector<128x128xf32>
      %cst_7 = arith.constant dense<0xFF800000> : vector<128xf32>
      %12 = vector.multi_reduction <maximumf>, %11, %cst_7 [1] : vector<128x128xf32> to vector<128xf32>
      %13 = vector.shape_cast %12 : vector<128xf32> to vector<128x1xf32>
      %14 = tpu.iota {dimensions = array<i32: 1>} : vector<128x128xi32>
      %15 = vector.broadcast %13 : vector<128x1xf32> to vector<128x128xf32>
      %16 = arith.cmpf oeq, %11, %15 : vector<128x128xf32>
      %c1073741824_i32 = arith.constant 1073741824 : i32
      %17 = vector.broadcast %c1073741824_i32 : i32 to vector<128x128xi32>
      %18 = arith.select %16, %14, %17 : vector<128x128xi1>, vector<128x128xi32>
      %cst_8 = arith.constant dense<2147483647> : vector<128xi32>
      %19 = vector.multi_reduction <minsi>, %18, %cst_8 [1] : vector<128x128xi32> to vector<128xi32>
      %20 = vector.shape_cast %19 : vector<128xi32> to vector<128x1xi32>
      %c0_9 = arith.constant 0 : index
      %c0_10 = arith.constant 0 : index
      %21 = vector.load %arg4[%c0_9, %c0_10] : memref<128x1xi32, #tpu.memory_space<vmem>>, vector<128x1xi32>
      tpu.vector_store %arg4[%c0_9, %c0_10], %20 {strides = array<i32>} : memref<128x1xi32, #tpu.memory_space<vmem>>, vector<128x1xi32>,
    } else {
    }
    return
  }
  func.func @transform_0(%arg0: i32) -> (i32, i32) {
    %c0_i32 = arith.constant 0 : i32
    %c0_i32_0 = arith.constant 0 : i32
    return %arg0, %c0_i32 : i32, i32
  }
  func.func @transform_1(%arg0: i32) -> (i32, i32) {
    %c0_i32 = arith.constant 0 : i32
    %c0_i32_0 = arith.constant 0 : i32
    %c0_i32_1 = arith.constant 0 : i32
    return %c0_i32, %c0_i32_0 : i32, i32
  }
  func.func @transform_2(%arg0: i32) -> (i32, i32) {
    %c0_i32 = arith.constant 0 : i32
    %c0_i32_0 = arith.constant 0 : i32
    %c0_i32_1 = arith.constant 0 : i32
    return %c0_i32, %c0_i32_0 : i32, i32
  }
  func.func @transform_3(%arg0: i32) -> (i32, i32) {
    %c0_i32 = arith.constant 0 : i32
    %c0_i32_0 = arith.constant 0 : i32
    return %arg0, %c0_i32 : i32, i32
  }
}

</mosaic_0001>

<llo_original>
// kernel: dual_softmax_match.3
$region0: #{dual_softmax_match.3}
  #allocation0 [shape = 'u32[]', space=smem, size = 0x4, offset = 0x4, fixed_abs, tag = 'smem constant byte address 0x4 - core index']
  #allocation1 [shape = 'u32[144,128]{1,0:T(1,128)}', space=vmem, size = 0x12000, scoped, tag = 'internal scratch']
  %s0 = inlined_call_operand.vmem [shape: f32[128,128], index: 0, kind: input, shape index: {}]
  %s1 = inlined_call_operand.vmem [shape: f32[128,128], index: 1, kind: input, shape index: {}]
  %s2 = inlined_call_operand.vmem [shape: f32[1,128], index: 2, kind: input, shape index: {}]
  %s3 = inlined_call_operand.vmem [shape: s32[128,1], index: 3, kind: output, shape index: {}]
  %s4 = sld [smem:[#allocation0]]
  $region26: #{dual_softmax_match.3} parent=0
    _
  %s6 = ssub.s32 1, %s4
  %s7 = scalar_select 0, %s6, %s4
  // Predicated region
  $region2: #{dual_softmax_match.3} parent=0 // pred_check
    _
  $region3: #{dual_softmax_match.3} parent=0 // pred_check_branch
    %9 = sbr.rel (0) target = $region5
  $region4: #{dual_softmax_match.3} parent=0 // pred_region
    _
  $region5: #{dual_softmax_match.3} parent=0 // pred_fallthru
    _
  // Predicated region
  $region6: #{dual_softmax_match.3} parent=0 // pred_check
    _
  $region7: #{dual_softmax_match.3} parent=0 // pred_check_branch
    %11 = sbr.rel (0) target = $region9
  $region8: #{dual_softmax_match.3} parent=0 // pred_region
    _
  $region9: #{dual_softmax_match.3} parent=0 // pred_fallthru
    _
  // Predicated region
  $region10: #{dual_softmax_match.3} parent=0 // pred_check
    _
  $region11: #{dual_softmax_match.3} parent=0 // pred_check_branch
    %13 = sbr.rel (0) target = $region13
  $region12: #{dual_softmax_match.3} parent=0 // pred_region
    _
  $region13: #{dual_softmax_match.3} parent=0 // pred_fallthru
    _
  %s14 = smul.u32 0, 128
  %p15 = scmp.lt.s32.totalorder %s14, 128
  // Predicated region
  $region14: #{dual_softmax_match.3} parent=0 // pred_check
    %p16 = pneg %p15
  $region15: #{dual_softmax_match.3} parent=0 // pred_check_branch
    %18 = sbr.rel (%p16) target = $region17
  $region16: #{dual_softmax_match.3} parent=0 // pred_region
    %v19 = vld [vmem:[%s0] sm:$0xff]
    %v20 = vld [vmem:[%s0 + $0x8] sm:$0xff]
    %v21 = vld [vmem:[%s0 + $0x10] sm:$0xff]
    %v22 = vld [vmem:[%s0 + $0x18] sm:$0xff]
    %v23 = vld [vmem:[%s0 + $0x20] sm:$0xff]
    %v24 = vld [vmem:[%s0 + $0x28] sm:$0xff]
    %v25 = vld [vmem:[%s0 + $0x30] sm:$0xff]
    %v26 = vld [vmem:[%s0 + $0x38] sm:$0xff]
    %v27 = vld [vmem:[%s0 + $0x40] sm:$0xff]
    %v28 = vld [vmem:[%s0 + $0x48] sm:$0xff]
    %v29 = vld [vmem:[%s0 + $0x50] sm:$0xff]
    %v30 = vld [vmem:[%s0 + $0x58] sm:$0xff]
    %v31 = vld [vmem:[%s0 + $0x60] sm:$0xff]
    %v32 = vld [vmem:[%s0 + $0x68] sm:$0xff]
    %v33 = vld [vmem:[%s0 + $0x70] sm:$0xff]
    %v34 = vld [vmem:[%s0 + $0x78] sm:$0xff]
    %v35 = vld [vmem:[%s1] sm:$0xff]
    %v36 = vld [vmem:[%s1 + $0x8] sm:$0xff]
    %v37 = vld [vmem:[%s1 + $0x10] sm:$0xff]
    %v38 = vld [vmem:[%s1 + $0x18] sm:$0xff]
    %v39 = vld [vmem:[%s1 + $0x20] sm:$0xff]
    %v40 = vld [vmem:[%s1 + $0x28] sm:$0xff]
    %v41 = vld [vmem:[%s1 + $0x30] sm:$0xff]
    %v42 = vld [vmem:[%s1 + $0x38] sm:$0xff]
    %v43 = vld [vmem:[%s1 + $0x40] sm:$0xff]
    %v44 = vld [vmem:[%s1 + $0x48] sm:$0xff]
    %v45 = vld [vmem:[%s1 + $0x50] sm:$0xff]
    %v46 = vld [vmem:[%s1 + $0x58] sm:$0xff]
    %v47 = vld [vmem:[%s1 + $0x60] sm:$0xff]
    %v48 = vld [vmem:[%s1 + $0x68] sm:$0xff]
    %v49 = vld [vmem:[%s1 + $0x70] sm:$0xff]
    %v50 = vld [vmem:[%s1 + $0x78] sm:$0xff]
    %51 = vmatprep.subr.mxu0 0.0
    %52 = vmatpush1.msra.mxu0 %v35
    %53 = vmatprep.subr.mxu0 0.0
    %54 = vmatpush1.msra.mxu0 %v36
    %55 = vmatprep.subr.mxu0 0.0
    %56 = vmatpush1.msra.mxu0 %v37
    %57 = vmatprep.subr.mxu0 0.0
    %58 = vmatpush1.msra.mxu0 %v38
    %59 = vmatprep.subr.mxu0 0.0
    %60 = vmatpush1.msra.mxu0 %v39
    %61 = vmatprep.subr.mxu0 0.0
    %62 = vmatpush1.msra.mxu0 %v40
    %63 = vmatprep.subr.mxu0 0.0
    %64 = vmatpush1.msra.mxu0 %v41
    %65 = vmatprep.subr.mxu0 0.0
    %66 = vmatpush1.msra.mxu0 %v42
    %67 = vmatprep.subr.mxu0 0.0
    %68 = vmatpush1.msra.mxu0 %v43
    %69 = vmatprep.subr.mxu0 0.0
    %70 = vmatpush1.msra.mxu0 %v44
    %71 = vmatprep.subr.mxu0 0.0
    %72 = vmatpush1.msra.mxu0 %v45
    %73 = vmatprep.subr.mxu0 0.0
    %74 = vmatpush1.msra.mxu0 %v46
    %75 = vmatprep.subr.mxu0 0.0
    %76 = vmatpush1.msra.mxu0 %v47
    %77 = vmatprep.subr.mxu0 0.0
    %78 = vmatpush1.msra.mxu0 %v48
    %79 = vmatprep.subr.mxu0 0.0
    %80 = vmatpush1.msra.mxu0 %v49
    %81 = vmatprep.subr.mxu0 0.0
    %82 = vmatpush1.msra.mxu0 %v50
    %83 = vmatprep.subr.mxu0 0.0
    %84 = vmatpush1.msra.mxu0 0.0
    %85 = vmatprep.subr.mxu0 0.0
    %86 = vmatpush1.msra.mxu0 0.0
    %87 = vmatprep.subr.mxu0 0.0
    %88 = vmatpush1.msra.mxu0 0.0
    %89 = vmatprep.subr.mxu0 0.0
    %90 = vmatpush1.msra.mxu0 0.0
    %91 = vmatprep.subr.mxu0 0.0
    %92 = vmatpush1.msra.mxu0 0.0
    %93 = vmatprep.subr.mxu0 0.0
    %94 = vmatpush1.msra.mxu0 0.0
    %95 = vmatprep.subr.mxu0 0.0
    %96 = vmatpush1.msra.mxu0 0.0
    %97 = vmatprep.subr.mxu0 0.0
    %98 = vmatpush1.msra.mxu0 0.0
    %99 = vmatprep.subr.mxu0 0.0
    %100 = vmatpush1.msra.mxu0 0.0
    %101 = vmatprep.subr.mxu0 0.0
    %102 = vmatpush1.msra.mxu0 0.0
    %103 = vmatprep.subr.mxu0 0.0
    %104 = vmatpush1.msra.mxu0 0.0
    %105 = vmatprep.subr.mxu0 0.0
    %106 = vmatpush1.msra.mxu0 0.0
    %107 = vmatprep.subr.mxu0 0.0
    %108 = vmatpush1.msra.mxu0 0.0
    %109 = vmatprep.subr.mxu0 0.0
    %110 = vmatpush1.msra.mxu0 0.0
    %111 = vmatprep.subr.mxu0 0.0
    %112 = vmatpush1.msra.mxu0 0.0
    %113 = vmatprep.subr.mxu0 0.0
    %114 = vmatpush1.msra.mxu0 0.0
    %115 = vmatprep.mubr.f32.mxu0 0.0
    %116 = vmatmul.mubr.f32.gmra.mrb[0].mxu0 %v19
    %v117 = vpop.f32.mrb[0].mxu0
    %v118 = vadd.f32 0.0, %v117
    %v119 = vpop.f32.mrb[0].mxu0
    %120 = vmatprep.mubr.f32.mxu0 0.0
    %121 = vmatmul.mubr.f32.gmra.mrb[0].mxu0 %v20
    %v122 = vpop.f32.mrb[0].mxu0
    %v123 = vadd.f32 0.0, %v122
    %v124 = vpop.f32.mrb[0].mxu0
    %125 = vmatprep.mubr.f32.mxu0 0.0
    %126 = vmatmul.mubr.f32.gmra.mrb[0].mxu0 %v21
    %v127 = vpop.f32.mrb[0].mxu0
    %v128 = vadd.f32 0.0, %v127
    %v129 = vpop.f32.mrb[0].mxu0
    %130 = vmatprep.mubr.f32.mxu0 0.0
    %131 = vmatmul.mubr.f32.gmra.mrb[0].mxu0 %v22
    %v132 = vpop.f32.mrb[0].mxu0
    %v133 = vadd.f32 0.0, %v132
    %v134 = vpop.f32.mrb[0].mxu0
    %135 = vmatprep.mubr.f32.mxu0 0.0
    %136 = vmatmul.mubr.f32.gmra.mrb[0].mxu0 %v23
    %v137 = vpop.f32.mrb[0].mxu0
    %v138 = vadd.f32 0.0, %v137
    %v139 = vpop.f32.mrb[0].mxu0
    %140 = vmatprep.mubr.f32.mxu0 0.0
    %141 = vmatmul.mubr.f32.gmra.mrb[0].mxu0 %v24
    %v142 = vpop.f32.mrb[0].mxu0
    %v143 = vadd.f32 0.0, %v142
    %v144 = vpop.f32.mrb[0].mxu0
    %145 = vmatprep.mubr.f32.mxu0 0.0
    %146 = vmatmul.mubr.f32.gmra.mrb[0].mxu0 %v25
    %v147 = vpop.f32.mrb[0].mxu0
    %v148 = vadd.f32 0.0, %v147
    %v149 = vpop.f32.mrb[0].mxu0
    %150 = vmatprep.mubr.f32.mxu0 0.0
    %151 = vmatmul.mubr.f32.gmra.mrb[0].mxu0 %v26
    %v152 = vpop.f32.mrb[0].mxu0
    %v153 = vadd.f32 0.0, %v152
    %v154 = vpop.f32.mrb[0].mxu0
    %155 = vmatprep.mubr.f32.mxu0 0.0
    %156 = vmatmul.mubr.f32.gmra.mrb[0].mxu0 %v27
    %v157 = vpop.f32.mrb[0].mxu0
    %v158 = vadd.f32 0.0, %v157
    %v159 = vpop.f32.mrb[0].mxu0
    %160 = vmatprep.mubr.f32.mxu0 0.0
    %161 = vmatmul.mubr.f32.gmra.mrb[0].mxu0 %v28
    %v162 = vpop.f32.mrb[0].mxu0
    %v163 = vadd.f32 0.0, %v162
    %v164 = vpop.f32.mrb[0].mxu0
    %165 = vmatprep.mubr.f32.mxu0 0.0
    %166 = vmatmul.mubr.f32.gmra.mrb[0].mxu0 %v29
    %v167 = vpop.f32.mrb[0].mxu0
    %v168 = vadd.f32 0.0, %v167
    %v169 = vpop.f32.mrb[0].mxu0
    %170 = vmatprep.mubr.f32.mxu0 0.0
    %171 = vmatmul.mubr.f32.gmra.mrb[0].mxu0 %v30
    %v172 = vpop.f32.mrb[0].mxu0
    %v173 = vadd.f32 0.0, %v172
    %v174 = vpop.f32.mrb[0].mxu0
    %175 = vmatprep.mubr.f32.mxu0 0.0
    %176 = vmatmul.mubr.f32.gmra.mrb[0].mxu0 %v31
    %v177 = vpop.f32.mrb[0].mxu0
    %v178 = vadd.f32 0.0, %v177
    %v179 = vpop.f32.mrb[0].mxu0
    %180 = vmatprep.mubr.f32.mxu0 0.0
    %181 = vmatmul.mubr.f32.gmra.mrb[0].mxu0 %v32
    %v182 = vpop.f32.mrb[0].mxu0
    %v183 = vadd.f32 0.0, %v182
    %v184 = vpop.f32.mrb[0].mxu0
    %185 = vmatprep.mubr.f32.mxu0 0.0
    %186 = vmatmul.mubr.f32.gmra.mrb[0].mxu0 %v33
    %v187 = vpop.f32.mrb[0].mxu0
    %v188 = vadd.f32 0.0, %v187
    %v189 = vpop.f32.mrb[0].mxu0
    %190 = vmatprep.mubr.f32.mxu0 0.0
    %191 = vmatmul.mubr.f32.gmra.mrb[0].mxu0 %v34
    %v192 = vpop.f32.mrb[0].mxu0
    %v193 = vadd.f32 0.0, %v192
    %v194 = vpop.f32.mrb[0].mxu0
    %195 = vdwg.mxu0
    %v196 = vld [vmem:[%s2] sm:$0x1]
    %v197 = vmul.f32 %v196, 0.5
    %v199 = vlaneseq
    %v200 = vshrl.u32 %v199, 7
    %v201 = vsub.s32 0, %v200
    %v202 = vrot.slane %v197, %v201
    %v204 = vsub.f32 %v118, %v202
    %v205 = vsub.f32 %v123, %v202
    %v206 = vsub.f32 %v128, %v202
    %v207 = vsub.f32 %v133, %v202
    %v208 = vsub.f32 %v138, %v202
    %v209 = vsub.f32 %v143, %v202
    %v210 = vsub.f32 %v148, %v202
    %v211 = vsub.f32 %v153, %v202
    %v212 = vsub.f32 %v158, %v202
    %v213 = vsub.f32 %v163, %v202
    %v214 = vsub.f32 %v168, %v202
    %v215 = vsub.f32 %v173, %v202
    %v216 = vsub.f32 %v178, %v202
    %v217 = vsub.f32 %v183, %v202
    %v218 = vsub.f32 %v188, %v202
    %v219 = vsub.f32 %v193, %v202
    %220 = vmax.xlane.f32.xlu0 %v204
    %v221 = vpop.xlane.xlu0 %220
    %222 = vmax.xlane.f32.xlu0 %v205
    %v223 = vpop.xlane.xlu0 %222
    %224 = vmax.xlane.f32.xlu0 %v206
    %v225 = vpop.xlane.xlu0 %224
    %226 = vmax.xlane.f32.xlu0 %v207
    %v227 = vpop.xlane.xlu0 %226
    %228 = vmax.xlane.f32.xlu0 %v208
    %v229 = vpop.xlane.xlu0 %228
    %230 = vmax.xlane.f32.xlu0 %v209
    %v231 = vpop.xlane.xlu0 %230
    %232 = vmax.xlane.f32.xlu0 %v210
    %v233 = vpop.xlane.xlu0 %232
    %234 = vmax.xlane.f32.xlu0 %v211
    %v235 = vpop.xlane.xlu0 %234
    %236 = vmax.xlane.f32.xlu0 %v212
    %v237 = vpop.xlane.xlu0 %236
    %238 = vmax.xlane.f32.xlu0 %v213
    %v239 = vpop.xlane.xlu0 %238
    %240 = vmax.xlane.f32.xlu0 %v214
    %v241 = vpop.xlane.xlu0 %240
    %242 = vmax.xlane.f32.xlu0 %v215
    %v243 = vpop.xlane.xlu0 %242
    %244 = vmax.xlane.f32.xlu0 %v216
    %v245 = vpop.xlane.xlu0 %244
    %246 = vmax.xlane.f32.xlu0 %v217
    %v247 = vpop.xlane.xlu0 %246
    %248 = vmax.xlane.f32.xlu0 %v218
    %v249 = vpop.xlane.xlu0 %248
    %250 = vmax.xlane.f32.xlu0 %v219
    %v251 = vpop.xlane.xlu0 %250
    %v252 = vlaneseq
    %v253 = vand.u32 %v252, 127
    %vm254 = vcmp.eq.f32.partialorder %v204, %v221
    %vm255 = vcmp.eq.f32.partialorder %v205, %v223
    %vm256 = vcmp.eq.f32.partialorder %v206, %v225
    %vm257 = vcmp.eq.f32.partialorder %v207, %v227
    %vm258 = vcmp.eq.f32.partialorder %v208, %v229
    %vm259 = vcmp.eq.f32.partialorder %v209, %v231
    %vm260 = vcmp.eq.f32.partialorder %v210, %v233
    %vm261 = vcmp.eq.f32.partialorder %v211, %v235
    %vm262 = vcmp.eq.f32.partialorder %v212, %v237
    %vm263 = vcmp.eq.f32.partialorder %v213, %v239
    %vm264 = vcmp.eq.f32.partialorder %v214, %v241
    %vm265 = vcmp.eq.f32.partialorder %v215, %v243
    %vm266 = vcmp.eq.f32.partialorder %v216, %v245
    %vm267 = vcmp.eq.f32.partialorder %v217, %v247
    %vm268 = vcmp.eq.f32.partialorder %v218, %v249
    %vm269 = vcmp.eq.f32.partialorder %v219, %v251
    %v270 = vsel %vm254, %v253, 1073741824
    %v271 = vsel %vm255, %v253, 1073741824
    %v272 = vsel %vm256, %v253, 1073741824
    %v273 = vsel %vm257, %v253, 1073741824
    %v274 = vsel %vm258, %v253, 1073741824
    %v275 = vsel %vm259, %v253, 1073741824
    %v276 = vsel %vm260, %v253, 1073741824
    %v277 = vsel %vm261, %v253, 1073741824
    %v278 = vsel %vm262, %v253, 1073741824
    %v279 = vsel %vm263, %v253, 1073741824
    %v280 = vsel %vm264, %v253, 1073741824
    %v281 = vsel %vm265, %v253, 1073741824
    %v282 = vsel %vm266, %v253, 1073741824
    %v283 = vsel %vm267, %v253, 1073741824
    %v284 = vsel %vm268, %v253, 1073741824
    %v285 = vsel %vm269, %v253, 1073741824
    %v286 = vand.u32 %v270, 65535
    %v287 = vshra.s32 %v270, 16
    %v288 = vcvt.s32.f32 %v286
    %v289 = vcvt.s32.f32 %v287
    %290 = vmin.xlane.f32.xlu0 %v289
    %v291 = vpop.xlane.xlu0 %290
    %vm292 = vcmp.eq.f32.partialorder %v289, %v291
    %v293 = vsel %vm292, %v288, inf
    %294 = vmin.xlane.f32.xlu0 %v293
    %v295 = vpop.xlane.xlu0 %294
    %v296 = vcvt.f32.s32 %v295
    %v297 = vcvt.f32.s32 %v291
    %v298 = vshll.u32 %v297, 16
    %v299 = vadd.s32 %v298, %v296
    %v300 = vand.u32 %v271, 65535
    %v301 = vshra.s32 %v271, 16
    %v302 = vcvt.s32.f32 %v300
    %v303 = vcvt.s32.f32 %v301
    %304 = vmin.xlane.f32.xlu0 %v303
    %v305 = vpop.xlane.xlu0 %304
    %vm306 = vcmp.eq.f32.partialorder %v303, %v305
    %v307 = vsel %vm306, %v302, inf
    %308 = vmin.xlane.f32.xlu0 %v307
    %v309 = vpop.xlane.xlu0 %308
    %v310 = vcvt.f32.s32 %v309
    %v311 = vcvt.f32.s32 %v305
    %v312 = vshll.u32 %v311, 16
    %v313 = vadd.s32 %v312, %v310
    %v314 = vand.u32 %v272, 65535
    %v315 = vshra.s32 %v272, 16
    %v316 = vcvt.s32.f32 %v314
    %v317 = vcvt.s32.f32 %v315
    %318 = vmin.xlane.f32.xlu0 %v317
    %v319 = vpop.xlane.xlu0 %318
    %vm320 = vcmp.eq.f32.partialorder %v317, %v319
    %v321 = vsel %vm320, %v316, inf
    %322 = vmin.xlane.f32.xlu0 %v321
    %v323 = vpop.xlane.xlu0 %322
    %v324 = vcvt.f32.s32 %v323
    %v325 = vcvt.f32.s32 %v319
    %v326 = vshll.u32 %v325, 16
    %v327 = vadd.s32 %v326, %v324
    %v328 = vand.u32 %v273, 65535
    %v329 = vshra.s32 %v273, 16
    %v330 = vcvt.s32.f32 %v328
    %v331 = vcvt.s32.f32 %v329
    %332 = vmin.xlane.f32.xlu0 %v331
    %v333 = vpop.xlane.xlu0 %332
    %vm334 = vcmp.eq.f32.partialorder %v331, %v333
    %v335 = vsel %vm334, %v330, inf
    %336 = vmin.xlane.f32.xlu0 %v335
    %v337 = vpop.xlane.xlu0 %336
    %v338 = vcvt.f32.s32 %v337
    %v339 = vcvt.f32.s32 %v333
    %v340 = vshll.u32 %v339, 16
    %v341 = vadd.s32 %v340, %v338
    %v342 = vand.u32 %v274, 65535
    %v343 = vshra.s32 %v274, 16
    %v344 = vcvt.s32.f32 %v342
    %v345 = vcvt.s32.f32 %v343
    %346 = vmin.xlane.f32.xlu0 %v345
    %v347 = vpop.xlane.xlu0 %346
    %vm348 = vcmp.eq.f32.partialorder %v345, %v347
    %v349 = vsel %vm348, %v344, inf
    %350 = vmin.xlane.f32.xlu0 %v349
    %v351 = vpop.xlane.xlu0 %350
    %v352 = vcvt.f32.s32 %v351
    %v353 = vcvt.f32.s32 %v347
    %v354 = vshll.u32 %v353, 16
    %v355 = vadd.s32 %v354, %v352
    %v356 = vand.u32 %v275, 65535
    %v357 = vshra.s32 %v275, 16
    %v358 = vcvt.s32.f32 %v356
    %v359 = vcvt.s32.f32 %v357
    %360 = vmin.xlane.f32.xlu0 %v359
    %v361 = vpop.xlane.xlu0 %360
    %vm362 = vcmp.eq.f32.partialorder %v359, %v361
    %v363 = vsel %vm362, %v358, inf
    %364 = vmin.xlane.f32.xlu0 %v363
    %v365 = vpop.xlane.xlu0 %364
    %v366 = vcvt.f32.s32 %v365
    %v367 = vcvt.f32.s32 %v361
    %v368 = vshll.u32 %v367, 16
    %v369 = vadd.s32 %v368, %v366
    %v370 = vand.u32 %v276, 65535
    %v371 = vshra.s32 %v276, 16
    %v372 = vcvt.s32.f32 %v370
    %v373 = vcvt.s32.f32 %v371
    %374 = vmin.xlane.f32.xlu0 %v373
    %v375 = vpop.xlane.xlu0 %374
    %vm376 = vcmp.eq.f32.partialorder %v373, %v375
    %v377 = vsel %vm376, %v372, inf
    %378 = vmin.xlane.f32.xlu0 %v377
    %v379 = vpop.xlane.xlu0 %378
    %v380 = vcvt.f32.s32 %v379
    %v381 = vcvt.f32.s32 %v375
    %v382 = vshll.u32 %v381, 16
    %v383 = vadd.s32 %v382, %v380
    %v384 = vand.u32 %v277, 65535
    %v385 = vshra.s32 %v277, 16
    %v386 = vcvt.s32.f32 %v384
    %v387 = vcvt.s32.f32 %v385
    %388 = vmin.xlane.f32.xlu0 %v387
    %v389 = vpop.xlane.xlu0 %388
    %vm390 = vcmp.eq.f32.partialorder %v387, %v389
    %v391 = vsel %vm390, %v386, inf
    %392 = vmin.xlane.f32.xlu0 %v391
    %v393 = vpop.xlane.xlu0 %392
    %v394 = vcvt.f32.s32 %v393
    %v395 = vcvt.f32.s32 %v389
    %v396 = vshll.u32 %v395, 16
    %v397 = vadd.s32 %v396, %v394
    %v398 = vand.u32 %v278, 65535
    %v399 = vshra.s32 %v278, 16
    %v400 = vcvt.s32.f32 %v398
    %v401 = vcvt.s32.f32 %v399
    %402 = vmin.xlane.f32.xlu0 %v401
    %v403 = vpop.xlane.xlu0 %402
    %vm404 = vcmp.eq.f32.partialorder %v401, %v403
    %v405 = vsel %vm404, %v400, inf
    %406 = vmin.xlane.f32.xlu0 %v405
    %v407 = vpop.xlane.xlu0 %406
    %v408 = vcvt.f32.s32 %v407
    %v409 = vcvt.f32.s32 %v403
    %v410 = vshll.u32 %v409, 16
    %v411 = vadd.s32 %v410, %v408
    %v412 = vand.u32 %v279, 65535
    %v413 = vshra.s32 %v279, 16
    %v414 = vcvt.s32.f32 %v412
    %v415 = vcvt.s32.f32 %v413
    %416 = vmin.xlane.f32.xlu0 %v415
    %v417 = vpop.xlane.xlu0 %416
    %vm418 = vcmp.eq.f32.partialorder %v415, %v417
    %v419 = vsel %vm418, %v414, inf
    %420 = vmin.xlane.f32.xlu0 %v419
    %v421 = vpop.xlane.xlu0 %420
    %v422 = vcvt.f32.s32 %v421
    %v423 = vcvt.f32.s32 %v417
    %v424 = vshll.u32 %v423, 16
    %v425 = vadd.s32 %v424, %v422
    %v426 = vand.u32 %v280, 65535
    %v427 = vshra.s32 %v280, 16
    %v428 = vcvt.s32.f32 %v426
    %v429 = vcvt.s32.f32 %v427
    %430 = vmin.xlane.f32.xlu0 %v429
    %v431 = vpop.xlane.xlu0 %430
    %vm432 = vcmp.eq.f32.partialorder %v429, %v431
    %v433 = vsel %vm432, %v428, inf
    %434 = vmin.xlane.f32.xlu0 %v433
    %v435 = vpop.xlane.xlu0 %434
    %v436 = vcvt.f32.s32 %v435
    %v437 = vcvt.f32.s32 %v431
    %v438 = vshll.u32 %v437, 16
    %v439 = vadd.s32 %v438, %v436
    %v440 = vand.u32 %v281, 65535
    %v441 = vshra.s32 %v281, 16
    %v442 = vcvt.s32.f32 %v440
    %v443 = vcvt.s32.f32 %v441
    %444 = vmin.xlane.f32.xlu0 %v443
    %v445 = vpop.xlane.xlu0 %444
    %vm446 = vcmp.eq.f32.partialorder %v443, %v445
    %v447 = vsel %vm446, %v442, inf
    %448 = vmin.xlane.f32.xlu0 %v447
    %v449 = vpop.xlane.xlu0 %448
    %v450 = vcvt.f32.s32 %v449
    %v451 = vcvt.f32.s32 %v445
    %v452 = vshll.u32 %v451, 16
    %v453 = vadd.s32 %v452, %v450
    %v454 = vand.u32 %v282, 65535
    %v455 = vshra.s32 %v282, 16
    %v456 = vcvt.s32.f32 %v454
    %v457 = vcvt.s32.f32 %v455
    %458 = vmin.xlane.f32.xlu0 %v457
    %v459 = vpop.xlane.xlu0 %458
    %vm460 = vcmp.eq.f32.partialorder %v457, %v459
    %v461 = vsel %vm460, %v456, inf
    %462 = vmin.xlane.f32.xlu0 %v461
    %v463 = vpop.xlane.xlu0 %462
    %v464 = vcvt.f32.s32 %v463
    %v465 = vcvt.f32.s32 %v459
    %v466 = vshll.u32 %v465, 16
    %v467 = vadd.s32 %v466, %v464
    %v468 = vand.u32 %v283, 65535
    %v469 = vshra.s32 %v283, 16
    %v470 = vcvt.s32.f32 %v468
    %v471 = vcvt.s32.f32 %v469
    %472 = vmin.xlane.f32.xlu0 %v471
    %v473 = vpop.xlane.xlu0 %472
    %vm474 = vcmp.eq.f32.partialorder %v471, %v473
    %v475 = vsel %vm474, %v470, inf
    %476 = vmin.xlane.f32.xlu0 %v475
    %v477 = vpop.xlane.xlu0 %476
    %v478 = vcvt.f32.s32 %v477
    %v479 = vcvt.f32.s32 %v473
    %v480 = vshll.u32 %v479, 16
    %v481 = vadd.s32 %v480, %v478
    %v482 = vand.u32 %v284, 65535
    %v483 = vshra.s32 %v284, 16
    %v484 = vcvt.s32.f32 %v482
    %v485 = vcvt.s32.f32 %v483
    %486 = vmin.xlane.f32.xlu0 %v485
    %v487 = vpop.xlane.xlu0 %486
    %vm488 = vcmp.eq.f32.partialorder %v485, %v487
    %v489 = vsel %vm488, %v484, inf
    %490 = vmin.xlane.f32.xlu0 %v489
    %v491 = vpop.xlane.xlu0 %490
    %v492 = vcvt.f32.s32 %v491
    %v493 = vcvt.f32.s32 %v487
    %v494 = vshll.u32 %v493, 16
    %v495 = vadd.s32 %v494, %v492
    %v496 = vand.u32 %v285, 65535
    %v497 = vshra.s32 %v285, 16
    %v498 = vcvt.s32.f32 %v496
    %v499 = vcvt.s32.f32 %v497
    %500 = vmin.xlane.f32.xlu0 %v499
    %v501 = vpop.xlane.xlu0 %500
    %vm502 = vcmp.eq.f32.partialorder %v499, %v501
    %v503 = vsel %vm502, %v498, inf
    %504 = vmin.xlane.f32.xlu0 %v503
    %v505 = vpop.xlane.xlu0 %504
    %v506 = vcvt.f32.s32 %v505
    %v507 = vcvt.f32.s32 %v501
    %v508 = vshll.u32 %v507, 16
    %v509 = vadd.s32 %v508, %v506
    %vm510 = vcmask 7168
    %511 = vst.msk [vmem:[%s3] sm:$0xff] %vm510, %v299
    %512 = vst.msk [vmem:[%s3 + $0x8] sm:$0xff] %vm510, %v313
    %513 = vst.msk [vmem:[%s3 + $0x10] sm:$0xff] %vm510, %v327
    %514 = vst.msk [vmem:[%s3 + $0x18] sm:$0xff] %vm510, %v341
    %515 = vst.msk [vmem:[%s3 + $0x20] sm:$0xff] %vm510, %v355
    %516 = vst.msk [vmem:[%s3 + $0x28] sm:$0xff] %vm510, %v369
    %517 = vst.msk [vmem:[%s3 + $0x30] sm:$0xff] %vm510, %v383
    %518 = vst.msk [vmem:[%s3 + $0x38] sm:$0xff] %vm510, %v397
    %519 = vst.msk [vmem:[%s3 + $0x40] sm:$0xff] %vm510, %v411
    %520 = vst.msk [vmem:[%s3 + $0x48] sm:$0xff] %vm510, %v425
    %521 = vst.msk [vmem:[%s3 + $0x50] sm:$0xff] %vm510, %v439
    %522 = vst.msk [vmem:[%s3 + $0x58] sm:$0xff] %vm510, %v453
    %523 = vst.msk [vmem:[%s3 + $0x60] sm:$0xff] %vm510, %v467
    %524 = vst.msk [vmem:[%s3 + $0x68] sm:$0xff] %vm510, %v481
    %525 = vst.msk [vmem:[%s3 + $0x70] sm:$0xff] %vm510, %v495
    %526 = vst.msk [vmem:[%s3 + $0x78] sm:$0xff] %vm510, %v509
  $region17: #{dual_softmax_match.3} parent=0 // pred_fallthru
    _
  // Predicated region
  $region18: #{dual_softmax_match.3} parent=0 // pred_check
    _
  $region19: #{dual_softmax_match.3} parent=0 // pred_check_branch
    %528 = sbr.rel (0) target = $region21
  $region20: #{dual_softmax_match.3} parent=0 // pred_region
    _
  $region21: #{dual_softmax_match.3} parent=0 // pred_fallthru
    _
  // Predicated region
  $region22: #{dual_softmax_match.3} parent=0 // pred_check
    _
  $region23: #{dual_softmax_match.3} parent=0 // pred_check_branch
    %530 = sbr.rel (0) target = $region25
  $region24: #{dual_softmax_match.3} parent=0 // pred_region
    _
  $region25: #{dual_softmax_match.3} parent=0 // pred_fallthru
    _

// kernel: dual_softmax_match.2
$region0: #{dual_softmax_match.2}
  #allocation0 [shape = 'u32[]', space=smem, size = 0x4, offset = 0x4, fixed_abs, tag = 'smem constant byte address 0x4 - core index']
  #allocation1 [shape = 'u32[144,128]{1,0:T(1,128)}', space=vmem, size = 0x12000, scoped, tag = 'internal scratch']
  #allocation2 [shape = 'f32[1,128]{1,0:T(1,128)}', space=vmem, size = 0x200, scoped, tag = 'scratch operand']
  #allocation3 [shape = 'f32[1,1]{1,0:T(1,128)}', space=vmem, size = 0x200, scoped, tag = 'scratch operand']
  #allocation4 [shape = 'f32[1,128]{1,0:T(1,128)}', space=vmem, size = 0x200, scoped, tag = 'scratch operand']
  #allocation5 [shape = 's32[1,128]{1,0:T(1,128)}', space=vmem, size = 0x200, scoped, tag = 'scratch operand']
  %s0 = inlined_call_operand.vmem [shape: f32[128,128], index: 0, kind: input, shape index: {}]
  %s1 = inlined_call_operand.vmem [shape: f32[128,128], index: 1, kind: input, shape index: {}]
  %s2 = inlined_call_operand.vmem [shape: f32[1,1,128], index: 2, kind: output, shape index: {0}]
  %s3 = inlined_call_operand.hbm [shape: f32[1,1,1], index: 3, kind: output, shape index: {1}]
  %s4 = inlined_call_operand.vmem [shape: f32[1,1,128], index: 4, kind: output, shape index: {2}]
  %s5 = inlined_call_operand.vmem [shape: s32[1,1,128], index: 5, kind: output, shape index: {3}]
  %6 = xla_tuple %s2, %s3, %s4, %s5
  %s7 = sld [smem:[#allocation0]]
  $region54: #{dual_softmax_match.2} parent=0
    _
  %s9 = ssub.s32 1, %s7
  %s10 = scalar_select 0, %s9, %s7
  $region1: #{dual_softmax_match.2} parent=0
    #allocation6 [shape = 'u8[512]{0}', space=vmem, size = 0x400, scoped, tag = 'output window, operand 1, single buffered']
    #allocation7 [shape = 's32[1]{0}', space=sflag, size = 0x4, scoped, tag = 'scoped memory for dual_softmax_match.2']
    %11 = vsyncpa [#allocation7], 0
    // Predicated region
    $region2: #{dual_softmax_match.2} parent=1 // pred_check
      _
    $region3: #{dual_softmax_match.2} parent=1 // pred_check_branch
      %13 = sbr.rel (0) target = $region5
    $region4: #{dual_softmax_match.2} parent=1 // pred_region
      %s14 = sadd.s32 0, 0
      %s15 = smul.u32 16, %s14
      %p16 = scmp.lt.s32.totalorder %s15, 15
      %s17 = scalar_select %p16, %s15, 15
      %s18 = smul.addr %s17, 8
      %s19 = scalar_lea.vmem %s0, %s18
      %s20 = sadd.s32 0, 0
      %s21 = smul.u32 16, %s20
    $region5: #{dual_softmax_match.2} parent=1 // pred_fallthru
      _
    // Predicated region
    $region6: #{dual_softmax_match.2} parent=1 // pred_check
      _
    $region7: #{dual_softmax_match.2} parent=1 // pred_check_branch
      %23 = sbr.rel (0) target = $region9
    $region8: #{dual_softmax_match.2} parent=1 // pred_region
      _
    $region9: #{dual_softmax_match.2} parent=1 // pred_fallthru
      _
    %s24 = sadd.s32 0, 0
    %s25 = smul.u32 16, %s24
    %p26 = scmp.lt.s32.totalorder %s25, 15
    %s27 = scalar_select %p26, %s25, 15
    %s28 = smul.addr %s27, 8
    %s29 = scalar_lea.vmem %s0, %s28
    %s30 = sadd.s32 0, 0
    %s31 = smul.u32 16, %s30
    %p32 = scmp.lt.s32.totalorder %s31, 15
    %s33 = scalar_select %p32, %s31, 15
    %s34 = smul.addr %s33, 8
    %s35 = scalar_lea.vmem %s0, %s34
    %s36 = sadd.s32 0, 0
    %s37 = smul.u32 16, %s36
    %s38 = sadd.s32 0, 0
    %s39 = smul.u32 %s38, 128
    %p40 = scmp.eq.s32.totalorder 0, 0
    // Predicated region
    $region10: #{dual_softmax_match.2} parent=1 // pred_check
      %p41 = pneg %p40
    $region11: #{dual_softmax_match.2} parent=1 // pred_check_branch
      %43 = sbr.rel (%p41) target = $region13
    $region12: #{dual_softmax_match.2} parent=1 // pred_region
      %44 = vst [vmem:[#allocation2] sm:$0x1] 0.0
      %vm45 = vcmask 0
      %46 = vst.msk [vmem:[#allocation3] sm:$0x1] %vm45, -inf
      %47 = vst [vmem:[#allocation4] sm:$0x1] -inf
      %48 = vst [vmem:[#allocation5] sm:$0x1] 0
    $region13: #{dual_softmax_match.2} parent=1 // pred_fallthru
      _
    %p49 = scmp.lt.s32.totalorder %s39, 128
    // Predicated region
    $region14: #{dual_softmax_match.2} parent=1 // pred_check
      %p50 = pneg %p49
    $region15: #{dual_softmax_match.2} parent=1 // pred_check_branch
      %52 = sbr.rel (%p50) target = $region17
    $region16: #{dual_softmax_match.2} parent=1 // pred_region
      %v53 = vld [vmem:[%s35] sm:$0xff]
      %v54 = vld [vmem:[%s35 + $0x8] sm:$0xff]
      %v55 = vld [vmem:[%s35 + $0x10] sm:$0xff]
      %v56 = vld [vmem:[%s35 + $0x18] sm:$0xff]
      %v57 = vld [vmem:[%s35 + $0x20] sm:$0xff]
      %v58 = vld [vmem:[%s35 + $0x28] sm:$0xff]
      %v59 = vld [vmem:[%s35 + $0x30] sm:$0xff]
      %v60 = vld [vmem:[%s35 + $0x38] sm:$0xff]
      %v61 = vld [vmem:[%s35 + $0x40] sm:$0xff]
      %v62 = vld [vmem:[%s35 + $0x48] sm:$0xff]
      %v63 = vld [vmem:[%s35 + $0x50] sm:$0xff]
      %v64 = vld [vmem:[%s35 + $0x58] sm:$0xff]
      %v65 = vld [vmem:[%s35 + $0x60] sm:$0xff]
      %v66 = vld [vmem:[%s35 + $0x68] sm:$0xff]
      %v67 = vld [vmem:[%s35 + $0x70] sm:$0xff]
      %v68 = vld [vmem:[%s35 + $0x78] sm:$0xff]
      %v69 = vld [vmem:[%s1] sm:$0xff]
      %v70 = vld [vmem:[%s1 + $0x8] sm:$0xff]
      %v71 = vld [vmem:[%s1 + $0x10] sm:$0xff]
      %v72 = vld [vmem:[%s1 + $0x18] sm:$0xff]
      %v73 = vld [vmem:[%s1 + $0x20] sm:$0xff]
      %v74 = vld [vmem:[%s1 + $0x28] sm:$0xff]
      %v75 = vld [vmem:[%s1 + $0x30] sm:$0xff]
      %v76 = vld [vmem:[%s1 + $0x38] sm:$0xff]
      %v77 = vld [vmem:[%s1 + $0x40] sm:$0xff]
      %v78 = vld [vmem:[%s1 + $0x48] sm:$0xff]
      %v79 = vld [vmem:[%s1 + $0x50] sm:$0xff]
      %v80 = vld [vmem:[%s1 + $0x58] sm:$0xff]
      %v81 = vld [vmem:[%s1 + $0x60] sm:$0xff]
      %v82 = vld [vmem:[%s1 + $0x68] sm:$0xff]
      %v83 = vld [vmem:[%s1 + $0x70] sm:$0xff]
      %v84 = vld [vmem:[%s1 + $0x78] sm:$0xff]
      %85 = vmatprep.subr.mxu0 0.0
      %86 = vmatpush1.msra.mxu0 %v69
      %87 = vmatprep.subr.mxu0 0.0
      %88 = vmatpush1.msra.mxu0 %v70
      %89 = vmatprep.subr.mxu0 0.0
      %90 = vmatpush1.msra.mxu0 %v71
      %91 = vmatprep.subr.mxu0 0.0
      %92 = vmatpush1.msra.mxu0 %v72
      %93 = vmatprep.subr.mxu0 0.0
      %94 = vmatpush1.msra.mxu0 %v73
      %95 = vmatprep.subr.mxu0 0.0
      %96 = vmatpush1.msra.mxu0 %v74
      %97 = vmatprep.subr.mxu0 0.0
      %98 = vmatpush1.msra.mxu0 %v75
      %99 = vmatprep.subr.mxu0 0.0
      %100 = vmatpush1.msra.mxu0 %v76
      %101 = vmatprep.subr.mxu0 0.0
      %102 = vmatpush1.msra.mxu0 %v77
      %103 = vmatprep.subr.mxu0 0.0
      %104 = vmatpush1.msra.mxu0 %v78
      %105 = vmatprep.subr.mxu0 0.0
      %106 = vmatpush1.msra.mxu0 %v79
      %107 = vmatprep.subr.mxu0 0.0
      %108 = vmatpush1.msra.mxu0 %v80
      %109 = vmatprep.subr.mxu0 0.0
      %110 = vmatpush1.msra.mxu0 %v81
      %111 = vmatprep.subr.mxu0 0.0
      %112 = vmatpush1.msra.mxu0 %v82
      %113 = vmatprep.subr.mxu0 0.0
      %114 = vmatpush1.msra.mxu0 %v83
      %115 = vmatprep.subr.mxu0 0.0
      %116 = vmatpush1.msra.mxu0 %v84
      %117 = vmatprep.subr.mxu0 0.0
      %118 = vmatpush1.msra.mxu0 0.0
      %119 = vmatprep.subr.mxu0 0.0
      %120 = vmatpush1.msra.mxu0 0.0
      %121 = vmatprep.subr.mxu0 0.0
      %122 = vmatpush1.msra.mxu0 0.0
      %123 = vmatprep.subr.mxu0 0.0
      %124 = vmatpush1.msra.mxu0 0.0
      %125 = vmatprep.subr.mxu0 0.0
      %126 = vmatpush1.msra.mxu0 0.0
      %127 = vmatprep.subr.mxu0 0.0
      %128 = vmatpush1.msra.mxu0 0.0
      %129 = vmatprep.subr.mxu0 0.0
      %130 = vmatpush1.msra.mxu0 0.0
      %131 = vmatprep.subr.mxu0 0.0
      %132 = vmatpush1.msra.mxu0 0.0
      %133 = vmatprep.subr.mxu0 0.0
      %134 = vmatpush1.msra.mxu0 0.0
      %135 = vmatprep.subr.mxu0 0.0
      %136 = vmatpush1.msra.mxu0 0.0
      %137 = vmatprep.subr.mxu0 0.0
      %138 = vmatpush1.msra.mxu0 0.0
      %139 = vmatprep.subr.mxu0 0.0
      %140 = vmatpush1.msra.mxu0 0.0
      %141 = vmatprep.subr.mxu0 0.0
      %142 = vmatpush1.msra.mxu0 0.0
      %143 = vmatprep.subr.mxu0 0.0
      %144 = vmatpush1.msra.mxu0 0.0
      %145 = vmatprep.subr.mxu0 0.0
      %146 = vmatpush1.msra.mxu0 0.0
      %147 = vmatprep.subr.mxu0 0.0
      %148 = vmatpush1.msra.mxu0 0.0
      %149 = vmatprep.mubr.f32.mxu0 0.0
      %150 = vmatmul.mubr.f32.gmra.mrb[0].mxu0 %v53
      %v151 = vpop.f32.mrb[0].mxu0
      %v152 = vadd.f32 0.0, %v151
      %v153 = vpop.f32.mrb[0].mxu0
      %154 = vmatprep.mubr.f32.mxu0 0.0
      %155 = vmatmul.mubr.f32.gmra.mrb[0].mxu0 %v54
      %v156 = vpop.f32.mrb[0].mxu0
      %v157 = vadd.f32 0.0, %v156
      %v158 = vpop.f32.mrb[0].mxu0
      %159 = vmatprep.mubr.f32.mxu0 0.0
      %160 = vmatmul.mubr.f32.gmra.mrb[0].mxu0 %v55
      %v161 = vpop.f32.mrb[0].mxu0
      %v162 = vadd.f32 0.0, %v161
      %v163 = vpop.f32.mrb[0].mxu0
      %164 = vmatprep.mubr.f32.mxu0 0.0
      %165 = vmatmul.mubr.f32.gmra.mrb[0].mxu0 %v56
      %v166 = vpop.f32.mrb[0].mxu0
      %v167 = vadd.f32 0.0, %v166
      %v168 = vpop.f32.mrb[0].mxu0
      %169 = vmatprep.mubr.f32.mxu0 0.0
      %170 = vmatmul.mubr.f32.gmra.mrb[0].mxu0 %v57
      %v171 = vpop.f32.mrb[0].mxu0
      %v172 = vadd.f32 0.0, %v171
      %v173 = vpop.f32.mrb[0].mxu0
      %174 = vmatprep.mubr.f32.mxu0 0.0
      %175 = vmatmul.mubr.f32.gmra.mrb[0].mxu0 %v58
      %v176 = vpop.f32.mrb[0].mxu0
      %v177 = vadd.f32 0.0, %v176
      %v178 = vpop.f32.mrb[0].mxu0
      %179 = vmatprep.mubr.f32.mxu0 0.0
      %180 = vmatmul.mubr.f32.gmra.mrb[0].mxu0 %v59
      %v181 = vpop.f32.mrb[0].mxu0
      %v182 = vadd.f32 0.0, %v181
      %v183 = vpop.f32.mrb[0].mxu0
      %184 = vmatprep.mubr.f32.mxu0 0.0
      %185 = vmatmul.mubr.f32.gmra.mrb[0].mxu0 %v60
      %v186 = vpop.f32.mrb[0].mxu0
      %v187 = vadd.f32 0.0, %v186
      %v188 = vpop.f32.mrb[0].mxu0
      %189 = vmatprep.mubr.f32.mxu0 0.0
      %190 = vmatmul.mubr.f32.gmra.mrb[0].mxu0 %v61
      %v191 = vpop.f32.mrb[0].mxu0
      %v192 = vadd.f32 0.0, %v191
      %v193 = vpop.f32.mrb[0].mxu0
      %194 = vmatprep.mubr.f32.mxu0 0.0
      %195 = vmatmul.mubr.f32.gmra.mrb[0].mxu0 %v62
      %v196 = vpop.f32.mrb[0].mxu0
      %v197 = vadd.f32 0.0, %v196
      %v198 = vpop.f32.mrb[0].mxu0
      %199 = vmatprep.mubr.f32.mxu0 0.0
      %200 = vmatmul.mubr.f32.gmra.mrb[0].mxu0 %v63
      %v201 = vpop.f32.mrb[0].mxu0
      %v202 = vadd.f32 0.0, %v201
      %v203 = vpop.f32.mrb[0].mxu0
      %204 = vmatprep.mubr.f32.mxu0 0.0
      %205 = vmatmul.mubr.f32.gmra.mrb[0].mxu0 %v64
      %v206 = vpop.f32.mrb[0].mxu0
      %v207 = vadd.f32 0.0, %v206
      %v208 = vpop.f32.mrb[0].mxu0
      %209 = vmatprep.mubr.f32.mxu0 0.0
      %210 = vmatmul.mubr.f32.gmra.mrb[0].mxu0 %v65
      %v211 = vpop.f32.mrb[0].mxu0
      %v212 = vadd.f32 0.0, %v211
      %v213 = vpop.f32.mrb[0].mxu0
      %214 = vmatprep.mubr.f32.mxu0 0.0
      %215 = vmatmul.mubr.f32.gmra.mrb[0].mxu0 %v66
      %v216 = vpop.f32.mrb[0].mxu0
      %v217 = vadd.f32 0.0, %v216
      %v218 = vpop.f32.mrb[0].mxu0
      %219 = vmatprep.mubr.f32.mxu0 0.0
      %220 = vmatmul.mubr.f32.gmra.mrb[0].mxu0 %v67
      %v221 = vpop.f32.mrb[0].mxu0
      %v222 = vadd.f32 0.0, %v221
      %v223 = vpop.f32.mrb[0].mxu0
      %224 = vmatprep.mubr.f32.mxu0 0.0
      %225 = vmatmul.mubr.f32.gmra.mrb[0].mxu0 %v68
      %v226 = vpop.f32.mrb[0].mxu0
      %v227 = vadd.f32 0.0, %v226
      %v228 = vpop.f32.mrb[0].mxu0
      %229 = vdwg.mxu0
      %230 = vmax.xlane.f32.xlu0 %v152
      %v231 = vpop.xlane.xlu0 %230
      %232 = vmax.xlane.f32.xlu0 %v157
      %v233 = vpop.xlane.xlu0 %232
      %234 = vmax.xlane.f32.xlu0 %v162
      %v235 = vpop.xlane.xlu0 %234
      %236 = vmax.xlane.f32.xlu0 %v167
      %v237 = vpop.xlane.xlu0 %236
      %238 = vmax.xlane.f32.xlu0 %v172
      %v239 = vpop.xlane.xlu0 %238
      %240 = vmax.xlane.f32.xlu0 %v177
      %v241 = vpop.xlane.xlu0 %240
      %242 = vmax.xlane.f32.xlu0 %v182
      %v243 = vpop.xlane.xlu0 %242
      %244 = vmax.xlane.f32.xlu0 %v187
      %v245 = vpop.xlane.xlu0 %244
      %246 = vmax.xlane.f32.xlu0 %v192
      %v247 = vpop.xlane.xlu0 %246
      %248 = vmax.xlane.f32.xlu0 %v197
      %v249 = vpop.xlane.xlu0 %248
      %250 = vmax.xlane.f32.xlu0 %v202
      %v251 = vpop.xlane.xlu0 %250
      %252 = vmax.xlane.f32.xlu0 %v207
      %v253 = vpop.xlane.xlu0 %252
      %254 = vmax.xlane.f32.xlu0 %v212
      %v255 = vpop.xlane.xlu0 %254
      %256 = vmax.xlane.f32.xlu0 %v217
      %v257 = vpop.xlane.xlu0 %256
      %258 = vmax.xlane.f32.xlu0 %v222
      %v259 = vpop.xlane.xlu0 %258
      %260 = vmax.xlane.f32.xlu0 %v227
      %v261 = vpop.xlane.xlu0 %260
      %v262 = vsub.f32 %v152, %v231
      %v263 = vsub.f32 %v157, %v233
      %v264 = vsub.f32 %v162, %v235
      %v265 = vsub.f32 %v167, %v237
      %v266 = vsub.f32 %v172, %v239
      %v267 = vsub.f32 %v177, %v241
      %v268 = vsub.f32 %v182, %v243
      %v269 = vsub.f32 %v187, %v245
      %v270 = vsub.f32 %v192, %v247
      %v271 = vsub.f32 %v197, %v249
      %v272 = vsub.f32 %v202, %v251
      %v273 = vsub.f32 %v207, %v253
      %v274 = vsub.f32 %v212, %v255
      %v275 = vsub.f32 %v217, %v257
      %v276 = vsub.f32 %v222, %v259
      %v277 = vsub.f32 %v227, %v261
      %v278 = vmul.f32 %v262, 1.442695
      %v279 = vpow.pop %v278
      %v280 = vmul.f32 %v263, 1.442695
      %v281 = vpow.pop %v280
      %v282 = vmul.f32 %v264, 1.442695
      %v283 = vpow.pop %v282
      %v284 = vmul.f32 %v265, 1.442695
      %v285 = vpow.pop %v284
      %v286 = vmul.f32 %v266, 1.442695
      %v287 = vpow.pop %v286
      %v288 = vmul.f32 %v267, 1.442695
      %v289 = vpow.pop %v288
      %v290 = vmul.f32 %v268, 1.442695
      %v291 = vpow.pop %v290
      %v292 = vmul.f32 %v269, 1.442695
      %v293 = vpow.pop %v292
      %v294 = vmul.f32 %v270, 1.442695
      %v295 = vpow.pop %v294
      %v296 = vmul.f32 %v271, 1.442695
      %v297 = vpow.pop %v296
      %v298 = vmul.f32 %v272, 1.442695
      %v299 = vpow.pop %v298
      %v300 = vmul.f32 %v273, 1.442695
      %v301 = vpow.pop %v300
      %v302 = vmul.f32 %v274, 1.442695
      %v303 = vpow.pop %v302
      %v304 = vmul.f32 %v275, 1.442695
      %v305 = vpow.pop %v304
      %v306 = vmul.f32 %v276, 1.442695
      %v307 = vpow.pop %v306
      %v308 = vmul.f32 %v277, 1.442695
      %v309 = vpow.pop %v308
      %310 = vadd.xlane.f32.xlu0 %v279
      %v311 = vpop.xlane.xlu0 %310
      %312 = vadd.xlane.f32.xlu0 %v281
      %v313 = vpop.xlane.xlu0 %312
      %314 = vadd.xlane.f32.xlu0 %v283
      %v315 = vpop.xlane.xlu0 %314
      %316 = vadd.xlane.f32.xlu0 %v285
      %v317 = vpop.xlane.xlu0 %316
      %318 = vadd.xlane.f32.xlu0 %v287
      %v319 = vpop.xlane.xlu0 %318
      %320 = vadd.xlane.f32.xlu0 %v289
      %v321 = vpop.xlane.xlu0 %320
      %322 = vadd.xlane.f32.xlu0 %v291
      %v323 = vpop.xlane.xlu0 %322
      %324 = vadd.xlane.f32.xlu0 %v293
      %v325 = vpop.xlane.xlu0 %324
      %326 = vadd.xlane.f32.xlu0 %v295
      %v327 = vpop.xlane.xlu0 %326
      %328 = vadd.xlane.f32.xlu0 %v297
      %v329 = vpop.xlane.xlu0 %328
      %330 = vadd.xlane.f32.xlu0 %v299
      %v331 = vpop.xlane.xlu0 %330
      %332 = vadd.xlane.f32.xlu0 %v301
      %v333 = vpop.xlane.xlu0 %332
      %334 = vadd.xlane.f32.xlu0 %v303
      %v335 = vpop.xlane.xlu0 %334
      %336 = vadd.xlane.f32.xlu0 %v305
      %v337 = vpop.xlane.xlu0 %336
      %338 = vadd.xlane.f32.xlu0 %v307
      %v339 = vpop.xlane.xlu0 %338
      %340 = vadd.xlane.f32.xlu0 %v309
      %v341 = vpop.xlane.xlu0 %340
      %v342 = vlog2.pop %v311
      %v343 = vmul.f32 %v342, 0.6931472
      %v344 = vlog2.pop %v313
      %v345 = vmul.f32 %v344, 0.6931472
      %v346 = vlog2.pop %v315
      %v347 = vmul.f32 %v346, 0.6931472
      %v348 = vlog2.pop %v317
      %v349 = vmul.f32 %v348, 0.6931472
      %v350 = vlog2.pop %v319
      %v351 = vmul.f32 %v350, 0.6931472
      %v352 = vlog2.pop %v321
      %v353 = vmul.f32 %v352, 0.6931472
      %v354 = vlog2.pop %v323
      %v355 = vmul.f32 %v354, 0.6931472
      %v356 = vlog2.pop %v325
      %v357 = vmul.f32 %v356, 0.6931472
      %v358 = vlog2.pop %v327
      %v359 = vmul.f32 %v358, 0.6931472
      %v360 = vlog2.pop %v329
      %v361 = vmul.f32 %v360, 0.6931472
      %v362 = vlog2.pop %v331
      %v363 = vmul.f32 %v362, 0.6931472
      %v364 = vlog2.pop %v333
      %v365 = vmul.f32 %v364, 0.6931472
      %v366 = vlog2.pop %v335
      %v367 = vmul.f32 %v366, 0.6931472
      %v368 = vlog2.pop %v337
      %v369 = vmul.f32 %v368, 0.6931472
      %v370 = vlog2.pop %v339
      %v371 = vmul.f32 %v370, 0.6931472
      %v372 = vlog2.pop %v341
      %v373 = vmul.f32 %v372, 0.6931472
      %v374 = vadd.f32 %v231, %v343
      %v375 = vadd.f32 %v233, %v345
      %v376 = vadd.f32 %v235, %v347
      %v377 = vadd.f32 %v237, %v349
      %v378 = vadd.f32 %v239, %v351
      %v379 = vadd.f32 %v241, %v353
      %v380 = vadd.f32 %v243, %v355
      %v381 = vadd.f32 %v245, %v357
      %v382 = vadd.f32 %v247, %v359
      %v383 = vadd.f32 %v249, %v361
      %v384 = vadd.f32 %v251, %v363
      %v385 = vadd.f32 %v253, %v365
      %v386 = vadd.f32 %v255, %v367
      %v387 = vadd.f32 %v257, %v369
      %v388 = vadd.f32 %v259, %v371
      %v389 = vadd.f32 %v261, %v373
      %v390 = vmul.f32 %v374, 0.5
      %v391 = vmul.f32 %v375, 0.5
      %v392 = vmul.f32 %v376, 0.5
      %v393 = vmul.f32 %v377, 0.5
      %v394 = vmul.f32 %v378, 0.5
      %v395 = vmul.f32 %v379, 0.5
      %v396 = vmul.f32 %v380, 0.5
      %v397 = vmul.f32 %v381, 0.5
      %v398 = vmul.f32 %v382, 0.5
      %v399 = vmul.f32 %v383, 0.5
      %v400 = vmul.f32 %v384, 0.5
      %v401 = vmul.f32 %v385, 0.5
      %v402 = vmul.f32 %v386, 0.5
      %v403 = vmul.f32 %v387, 0.5
      %v404 = vmul.f32 %v388, 0.5
      %v405 = vmul.f32 %v389, 0.5
      %v406 = vsub.f32 %v152, %v390
      %v407 = vsub.f32 %v157, %v391
      %v408 = vsub.f32 %v162, %v392
      %v409 = vsub.f32 %v167, %v393
      %v410 = vsub.f32 %v172, %v394
      %v411 = vsub.f32 %v177, %v395
      %v412 = vsub.f32 %v182, %v396
      %v413 = vsub.f32 %v187, %v397
      %v414 = vsub.f32 %v192, %v398
      %v415 = vsub.f32 %v197, %v399
      %v416 = vsub.f32 %v202, %v400
      %v417 = vsub.f32 %v207, %v401
      %v418 = vsub.f32 %v212, %v402
      %v419 = vsub.f32 %v217, %v403
      %v420 = vsub.f32 %v222, %v404
      %v421 = vsub.f32 %v227, %v405
      %v422 = vmax.f32 %v406, %v410
      %v423 = vmax.f32 %v407, %v411
      %v424 = vmax.f32 %v408, %v412
      %v425 = vmax.f32 %v409, %v413
      %v426 = vmax.f32 %v422, %v414
      %v427 = vmax.f32 %v423, %v415
      %v428 = vmax.f32 %v424, %v416
      %v429 = vmax.f32 %v425, %v417
      %v430 = vmax.f32 %v426, %v418
      %v431 = vmax.f32 %v427, %v419
      %v432 = vmax.f32 %v428, %v420
      %v433 = vmax.f32 %v429, %v421
      %v434 = vmax.f32 %v430, %v431
      %v435 = vmax.f32 %v432, %v433
      %v436 = vmax.f32 %v434, %v435
      %v437 = vrot.slane %v436, 4
      %v438 = vmax.f32 %v436, %v437
      %v439 = vrot.slane %v438, 2
      %v440 = vmax.f32 %v438, %v439
      %v441 = vrot.slane %v440, 1
      %v442 = vmax.f32 %v440, %v441
      %v443 = vlaneseq
      %v444 = vshrl.u32 %v443, 7
      %v445 = vadd.s32 %v444, 8
      %v446 = vadd.s32 %v444, 16
      %v447 = vadd.s32 %v444, 24
      %v448 = vadd.s32 %v444, 32
      %v449 = vadd.s32 %v444, 40
      %v450 = vadd.s32 %v444, 48
      %v451 = vadd.s32 %v444, 56
      %v452 = vadd.s32 %v444, 64
      %v453 = vadd.s32 %v444, 72
      %v454 = vadd.s32 %v444, 80
      %v455 = vadd.s32 %v444, 88
      %v456 = vadd.s32 %v444, 96
      %v457 = vadd.s32 %v444, 104
      %v458 = vadd.s32 %v444, 112
      %v459 = vadd.s32 %v444, 120
      %vm460 = vcmp.eq.f32.partialorder %v406, %v442
      %vm461 = vcmp.eq.f32.partialorder %v407, %v442
      %vm462 = vcmp.eq.f32.partialorder %v408, %v442
      %vm463 = vcmp.eq.f32.partialorder %v409, %v442
      %vm464 = vcmp.eq.f32.partialorder %v410, %v442
      %vm465 = vcmp.eq.f32.partialorder %v411, %v442
      %vm466 = vcmp.eq.f32.partialorder %v412, %v442
      %vm467 = vcmp.eq.f32.partialorder %v413, %v442
      %vm468 = vcmp.eq.f32.partialorder %v414, %v442
      %vm469 = vcmp.eq.f32.partialorder %v415, %v442
      %vm470 = vcmp.eq.f32.partialorder %v416, %v442
      %vm471 = vcmp.eq.f32.partialorder %v417, %v442
      %vm472 = vcmp.eq.f32.partialorder %v418, %v442
      %vm473 = vcmp.eq.f32.partialorder %v419, %v442
      %vm474 = vcmp.eq.f32.partialorder %v420, %v442
      %vm475 = vcmp.eq.f32.partialorder %v421, %v442
      %v476 = vsel %vm460, %v444, 1073741824
      %v477 = vsel %vm461, %v445, 1073741824
      %v478 = vsel %vm462, %v446, 1073741824
      %v479 = vsel %vm463, %v447, 1073741824
      %v480 = vsel %vm464, %v448, 1073741824
      %v481 = vsel %vm465, %v449, 1073741824
      %v482 = vsel %vm466, %v450, 1073741824
      %v483 = vsel %vm467, %v451, 1073741824
      %v484 = vsel %vm468, %v452, 1073741824
      %v485 = vsel %vm469, %v453, 1073741824
      %v486 = vsel %vm470, %v454, 1073741824
      %v487 = vsel %vm471, %v455, 1073741824
      %v488 = vsel %vm472, %v456, 1073741824
      %v489 = vsel %vm473, %v457, 1073741824
      %v490 = vsel %vm474, %v458, 1073741824
      %v491 = vsel %vm475, %v459, 1073741824
      %vm492 = vcmp.lt.s32.totalorder %v476, %v480
      %v493 = vsel %vm492, %v476, %v480
      %vm494 = vcmp.lt.s32.totalorder %v477, %v481
      %v495 = vsel %vm494, %v477, %v481
      %vm496 = vcmp.lt.s32.totalorder %v478, %v482
      %v497 = vsel %vm496, %v478, %v482
      %vm498 = vcmp.lt.s32.totalorder %v479, %v483
      %v499 = vsel %vm498, %v479, %v483
      %vm500 = vcmp.lt.s32.totalorder %v493, %v484
      %v501 = vsel %vm500, %v493, %v484
      %vm502 = vcmp.lt.s32.totalorder %v495, %v485
      %v503 = vsel %vm502, %v495, %v485
      %vm504 = vcmp.lt.s32.totalorder %v497, %v486
      %v505 = vsel %vm504, %v497, %v486
      %vm506 = vcmp.lt.s32.totalorder %v499, %v487
      %v507 = vsel %vm506, %v499, %v487
      %vm508 = vcmp.lt.s32.totalorder %v501, %v488
      %v509 = vsel %vm508, %v501, %v488
      %vm510 = vcmp.lt.s32.totalorder %v503, %v489
      %v511 = vsel %vm510, %v503, %v489
      %vm512 = vcmp.lt.s32.totalorder %v505, %v490
      %v513 = vsel %vm512, %v505, %v490
      %vm514 = vcmp.lt.s32.totalorder %v507, %v491
      %v515 = vsel %vm514, %v507, %v491
      %vm516 = vcmp.lt.s32.totalorder %v509, %v511
      %v517 = vsel %vm516, %v509, %v511
      %vm518 = vcmp.lt.s32.totalorder %v513, %v515
      %v519 = vsel %vm518, %v513, %v515
      %vm520 = vcmp.lt.s32.totalorder %v517, %v519
      %v521 = vsel %vm520, %v517, %v519
      %v522 = vrot.slane %v521, 4
      %vm523 = vcmp.lt.s32.totalorder %v521, %v522
      %v524 = vsel %vm523, %v521, %v522
      %v525 = vrot.slane %v524, 2
      %vm526 = vcmp.lt.s32.totalorder %v524, %v525
      %v527 = vsel %vm526, %v524, %v525
      %v528 = vrot.slane %v527, 1
      %vm529 = vcmp.lt.s32.totalorder %v527, %v528
      %v530 = vsel %vm529, %v527, %v528
      %v531 = vstv %s39
      %v532 = vadd.s32 %v530, %v531
      %v533 = vld [vmem:[#allocation4] sm:$0x1]
      %vm534 = vcmp.gt.f32.partialorder %v442, %v533
      %v535 = vld [vmem:[#allocation5] sm:$0x1]
      %v536 = vsel %vm534, %v532, %v535
      %537 = vst [vmem:[#allocation5] sm:$0x1] %v536
      %v538 = vld [vmem:[#allocation4] sm:$0x1]
      %v539 = vmax.f32 %v538, %v442
      %540 = vst [vmem:[#allocation4] sm:$0x1] %v539
      %v541 = vmax.f32 %v231, %v239
      %v542 = vmax.f32 %v233, %v241
      %v543 = vmax.f32 %v235, %v243
      %v544 = vmax.f32 %v237, %v245
      %v545 = vmax.f32 %v541, %v247
      %v546 = vmax.f32 %v542, %v249
      %v547 = vmax.f32 %v543, %v251
      %v548 = vmax.f32 %v544, %v253
      %v549 = vmax.f32 %v545, %v255
      %v550 = vmax.f32 %v546, %v257
      %v551 = vmax.f32 %v547, %v259
      %v552 = vmax.f32 %v548, %v261
      %v553 = vmax.f32 %v549, %v550
      %v554 = vmax.f32 %v551, %v552
      %v555 = vmax.f32 %v553, %v554
      %v556 = vrot.slane %v555, 4
      %v557 = vmax.f32 %v555, %v556
      %v558 = vrot.slane %v557, 2
      %v559 = vmax.f32 %v557, %v558
      %v560 = vrot.slane %v559, 1
      %v561 = vmax.f32 %v559, %v560
      %v562 = vld [vmem:[#allocation3] sm:$0x1]
      %v563 = vmax.f32 %v562, %v561
      %v565 = vlaneseq
      %v566 = vshrl.u32 %v565, 7
      %v567 = vsub.s32 0, %v566
      %v568 = vrot.slane %v563, %v567
      %v570 = vsub.f32 %v231, %v568
      %v571 = vsub.f32 %v233, %v568
      %v572 = vsub.f32 %v235, %v568
      %v573 = vsub.f32 %v237, %v568
      %v574 = vsub.f32 %v239, %v568
      %v575 = vsub.f32 %v241, %v568
      %v576 = vsub.f32 %v243, %v568
      %v577 = vsub.f32 %v245, %v568
      %v578 = vsub.f32 %v247, %v568
      %v579 = vsub.f32 %v249, %v568
      %v580 = vsub.f32 %v251, %v568
      %v581 = vsub.f32 %v253, %v568
      %v582 = vsub.f32 %v255, %v568
      %v583 = vsub.f32 %v257, %v568
      %v584 = vsub.f32 %v259, %v568
      %v585 = vsub.f32 %v261, %v568
      %v586 = vmul.f32 %v570, 1.442695
      %v587 = vpow.pop %v586
      %v588 = vmul.f32 %v571, 1.442695
      %v589 = vpow.pop %v588
      %v590 = vmul.f32 %v572, 1.442695
      %v591 = vpow.pop %v590
      %v592 = vmul.f32 %v573, 1.442695
      %v593 = vpow.pop %v592
      %v594 = vmul.f32 %v574, 1.442695
      %v595 = vpow.pop %v594
      %v596 = vmul.f32 %v575, 1.442695
      %v597 = vpow.pop %v596
      %v598 = vmul.f32 %v576, 1.442695
      %v599 = vpow.pop %v598
      %v600 = vmul.f32 %v577, 1.442695
      %v601 = vpow.pop %v600
      %v602 = vmul.f32 %v578, 1.442695
      %v603 = vpow.pop %v602
      %v604 = vmul.f32 %v579, 1.442695
      %v605 = vpow.pop %v604
      %v606 = vmul.f32 %v580, 1.442695
      %v607 = vpow.pop %v606
      %v608 = vmul.f32 %v581, 1.442695
      %v609 = vpow.pop %v608
      %v610 = vmul.f32 %v582, 1.442695
      %v611 = vpow.pop %v610
      %v612 = vmul.f32 %v583, 1.442695
      %v613 = vpow.pop %v612
      %v614 = vmul.f32 %v584, 1.442695
      %v615 = vpow.pop %v614
      %v616 = vmul.f32 %v585, 1.442695
      %v617 = vpow.pop %v616
      %v618 = vsub.f32 %v562, %v563
      %v619 = vmul.f32 %v618, 1.442695
      %v620 = vpow.pop %v619
      %v621 = vld [vmem:[#allocation2] sm:$0x1]
      %623 = vset.pattern.permute.xlu0 0
      %624 = vperm.xlu0 %623, %v620
      %v625 = vpop.permute.xlu0 %624
      %v627 = vlaneseq
      %v628 = vshrl.u32 %v627, 7
      %v629 = vsub.s32 0, %v628
      %v630 = vrot.slane %v625, %v629
      %v631 = vmul.f32 %v621, %v630
      %633 = vset.pattern.permute.xlu0 0
      %634 = vperm.xlu0 %633, %v587
      %v635 = vpop.permute.xlu0 %634
      %638 = vset.pattern.permute.xlu0 0
      %639 = vperm.xlu0 %638, %v589
      %v640 = vpop.permute.xlu0 %639
      %643 = vset.pattern.permute.xlu0 0
      %644 = vperm.xlu0 %643, %v591
      %v645 = vpop.permute.xlu0 %644
      %648 = vset.pattern.permute.xlu0 0
      %649 = vperm.xlu0 %648, %v593
      %v650 = vpop.permute.xlu0 %649
      %653 = vset.pattern.permute.xlu0 0
      %654 = vperm.xlu0 %653, %v595
      %v655 = vpop.permute.xlu0 %654
      %658 = vset.pattern.permute.xlu0 0
      %659 = vperm.xlu0 %658, %v597
      %v660 = vpop.permute.xlu0 %659
      %663 = vset.pattern.permute.xlu0 0
      %664 = vperm.xlu0 %663, %v599
      %v665 = vpop.permute.xlu0 %664
      %668 = vset.pattern.permute.xlu0 0
      %669 = vperm.xlu0 %668, %v601
      %v670 = vpop.permute.xlu0 %669
      %673 = vset.pattern.permute.xlu0 0
      %674 = vperm.xlu0 %673, %v603
      %v675 = vpop.permute.xlu0 %674
      %678 = vset.pattern.permute.xlu0 0
      %679 = vperm.xlu0 %678, %v605
      %v680 = vpop.permute.xlu0 %679
      %683 = vset.pattern.permute.xlu0 0
      %684 = vperm.xlu0 %683, %v607
      %v685 = vpop.permute.xlu0 %684
      %688 = vset.pattern.permute.xlu0 0
      %689 = vperm.xlu0 %688, %v609
      %v690 = vpop.permute.xlu0 %689
      %693 = vset.pattern.permute.xlu0 0
      %694 = vperm.xlu0 %693, %v611
      %v695 = vpop.permute.xlu0 %694
      %698 = vset.pattern.permute.xlu0 0
      %699 = vperm.xlu0 %698, %v613
      %v700 = vpop.permute.xlu0 %699
      %703 = vset.pattern.permute.xlu0 0
      %704 = vperm.xlu0 %703, %v615
      %v705 = vpop.permute.xlu0 %704
      %708 = vset.pattern.permute.xlu0 0
      %709 = vperm.xlu0 %708, %v617
      %v710 = vpop.permute.xlu0 %709
      %v712 = vmul.f32 %v279, %v635
      %v713 = vmul.f32 %v281, %v640
      %v714 = vmul.f32 %v283, %v645
      %v715 = vmul.f32 %v285, %v650
      %v716 = vmul.f32 %v287, %v655
      %v717 = vmul.f32 %v289, %v660
      %v718 = vmul.f32 %v291, %v665
      %v719 = vmul.f32 %v293, %v670
      %v720 = vmul.f32 %v295, %v675
      %v721 = vmul.f32 %v297, %v680
      %v722 = vmul.f32 %v299, %v685
      %v723 = vmul.f32 %v301, %v690
      %v724 = vmul.f32 %v303, %v695
      %v725 = vmul.f32 %v305, %v700
      %v726 = vmul.f32 %v307, %v705
      %v727 = vmul.f32 %v309, %v710
      %v728 = vadd.f32 %v712, %v713
      %v729 = vadd.f32 %v728, %v714
      %v730 = vadd.f32 %v729, %v715
      %v731 = vadd.f32 %v730, %v716
      %v732 = vadd.f32 %v731, %v717
      %v733 = vadd.f32 %v732, %v718
      %v734 = vadd.f32 %v733, %v719
      %v735 = vadd.f32 %v734, %v720
      %v736 = vadd.f32 %v735, %v721
      %v737 = vadd.f32 %v736, %v722
      %v738 = vadd.f32 %v737, %v723
      %v739 = vadd.f32 %v738, %v724
      %v740 = vadd.f32 %v739, %v725
      %v741 = vadd.f32 %v740, %v726
      %v742 = vadd.f32 %v741, %v727
      %v743 = vrot.slane %v742, 4
      %v744 = vadd.f32 %v742, %v743
      %v745 = vrot.slane %v744, 2
      %v746 = vadd.f32 %v744, %v745
      %v747 = vrot.slane %v746, 1
      %v748 = vadd.f32 %v746, %v747
      %v749 = vadd.f32 %v631, %v748
      %750 = vst [vmem:[#allocation2] sm:$0x1] %v749
      %vm751 = vcmask 0
      %752 = vst.msk [vmem:[#allocation3] sm:$0x1] %vm751, %v563
    $region17: #{dual_softmax_match.2} parent=1 // pred_fallthru
      _
    // Predicated region
    $region18: #{dual_softmax_match.2} parent=1 // pred_check
      %p753 = pneg %p40
    $region19: #{dual_softmax_match.2} parent=1 // pred_check_branch
      %755 = sbr.rel (%p753) target = $region21
    $region20: #{dual_softmax_match.2} parent=1 // pred_region
      %v756 = vld [vmem:[#allocation2] sm:$0x1]
      %757 = vst [vmem:[%s2] sm:$0x1] %v756
      %v758 = vld [vmem:[#allocation3] sm:$0x1]
      %vm759 = vcmask 0
      %760 = vst.msk [vmem:[#allocation6] sm:$0x1] %vm759, %v758
      %v761 = vld [vmem:[#allocation4] sm:$0x1]
      %762 = vst [vmem:[%s4] sm:$0x1] %v761
      %v763 = vld [vmem:[#allocation5] sm:$0x1]
      %764 = vst [vmem:[%s5] sm:$0x1] %v763
    $region21: #{dual_softmax_match.2} parent=1 // pred_fallthru
      _
    // Predicated region
    $region22: #{dual_softmax_match.2} parent=1 // pred_check
      _
    $region23: #{dual_softmax_match.2} parent=1 // pred_check_branch
      %766 = sbr.rel (0) target = $region25
    $region24: #{dual_softmax_match.2} parent=1 // pred_region
      _
    $region25: #{dual_softmax_match.2} parent=1 // pred_fallthru
      _
    // Predicated region
    $region26: #{dual_softmax_match.2} parent=1 // pred_check
      _
    $region27: #{dual_softmax_match.2} parent=1 // pred_check_branch
      %768 = sbr.rel (0) target = $region29
    $region28: #{dual_softmax_match.2} parent=1 // pred_region
      %s770 = ssub.s32 16, 16
      %771 = vsyncadd [#allocation7], %s770
      %s773 = sshll.u32 [#allocation6], 4
      %s774 = int_to_ptr.vmem [resolvable:$true] %s773
      %776 = dma.vmem_to_hbm [thread:$0]  %s774, 16, %s3, [#allocation7]
    $region29: #{dual_softmax_match.2} parent=1 // pred_fallthru
      _
    // Predicated region
    $region30: #{dual_softmax_match.2} parent=1 // pred_check
      _
    $region31: #{dual_softmax_match.2} parent=1 // pred_check_branch
      %778 = sbr.rel (0) target = $region33
    $region32: #{dual_softmax_match.2} parent=1 // pred_region
      _
    $region33: #{dual_softmax_match.2} parent=1 // pred_fallthru
      _
    // Predicated region
    $region34: #{dual_softmax_match.2} parent=1 // pred_check
      _
    $region35: #{dual_softmax_match.2} parent=1 // pred_check_branch
      %780 = sbr.rel (0) target = $region37
    $region36: #{dual_softmax_match.2} parent=1 // pred_region
      _
    $region37: #{dual_softmax_match.2} parent=1 // pred_fallthru
      _
    // Predicated region
    $region38: #{dual_softmax_match.2} parent=1 // pred_check
      _
    $region39: #{dual_softmax_match.2} parent=1 // pred_check_branch
      %782 = sbr.rel (0) target = $region41
    $region40: #{dual_softmax_match.2} parent=1 // pred_region
      _
    $region41: #{dual_softmax_match.2} parent=1 // pred_fallthru
      _
    // Predicated region
    $region42: #{dual_softmax_match.2} parent=1 // pred_check
      _
    $region43: #{dual_softmax_match.2} parent=1 // pred_check_branch
      %784 = sbr.rel (0) target = $region45
    $region44: #{dual_softmax_match.2} parent=1 // pred_region
      %785 = dma.done [#allocation7], 16
    $region45: #{dual_softmax_match.2} parent=1 // pred_fallthru
      _
    // Predicated region
    $region46: #{dual_softmax_match.2} parent=1 // pred_check
      _
    $region47: #{dual_softmax_match.2} parent=1 // pred_check_branch
      %787 = sbr.rel (0) target = $region49
    $region48: #{dual_softmax_match.2} parent=1 // pred_region
      _
    $region49: #{dual_softmax_match.2} parent=1 // pred_fallthru
      _
    // Predicated region
    $region50: #{dual_softmax_match.2} parent=1 // pred_check
      _
    $region51: #{dual_softmax_match.2} parent=1 // pred_check_branch
      %789 = sbr.rel (0) target = $region53
    $region52: #{dual_softmax_match.2} parent=1 // pred_region
      _
    $region53: #{dual_softmax_match.2} parent=1 // pred_fallthru
      _
    %790 = vsyncpa [#allocation7], 1

</llo_original>
